<compile_context>
chip_gen: v6e
topology: v6e:2x2x1
jax: 0.10.0
libtpu: 0.0.40
codegen_flags: <defaults>
</compile_context>

<pallas_src>
import functools

import jax
import jax.numpy as jnp
from jax.experimental import pallas as pl
from jax.experimental.pallas import tpu as pltpu


def _tpcw_kernel(x_ref, w_ref, b_ref, out_ref, *,
                 batch, seq_len, embed, hidden, num_heads, token_num, w_offsets):
    B, T, E, H = batch, seq_len, embed, hidden
    out_dim = num_heads * token_num
    o_ih, o_hr, o_hz, o_hn, o_fc = w_offsets

    # ---- Unpack packed operands (static, sublane-aligned slices; one-time cost) ----
    w_ih = w_ref[o_ih:o_ih + E, 0:3 * H]        # (E, 3H)  input proj, torch gate order r,z,n
    w_hr = w_ref[o_hr:o_hr + H, 0:H]            # (H, H)
    w_hz = w_ref[o_hz:o_hz + H, 0:H]            # (H, H)
    w_hn = w_ref[o_hn:o_hn + H, 0:H]            # (H, H)
    w_fc = w_ref[o_fc:o_fc + H, 0:out_dim]      # (H, out_dim)

    b_gi = b_ref[0:1, 0:3 * H]                  # (1, 3H) = b_ih + [b_hr, b_hz, 0]
    b_hn = jnp.broadcast_to(b_ref[1:2, 0:H], (B, H))   # hoisted broadcast (reused T-1 times)
    b_fc = b_ref[2:3, 0:out_dim]                # (1, out_dim)

    def sigmoid(v):                             # stable, EUP-tanh based
        return 0.5 * (jnp.tanh(0.5 * v) + 1.0)

    # ---- Hoisted input projection: one MXU matmul covers every timestep ----
    gi = jnp.dot(x_ref[...], w_ih, preferred_element_type=jnp.float32) + b_gi  # (T*B, 3H)
    # Per-gate split done ONCE (off the serial h-dependency chain).
    gi_r = gi[:, 0:H]
    gi_z = gi[:, H:2 * H]
    gi_n = gi[:, 2 * H:3 * H]

    # ---- GRU recurrence (torch gate order r,z,n), fully unrolled; t = 0 peeled (h0=0) ----
    r = sigmoid(gi_r[0:B, :])
    z = sigmoid(gi_z[0:B, :])
    n = jnp.tanh(gi_n[0:B, :] + r * b_hn)
    h = (1.0 - z) * n
    for t in range(1, T):
        lo = t * B
        gh_r = jnp.dot(h, w_hr, preferred_element_type=jnp.float32)   # (B, H), offset 0
        gh_z = jnp.dot(h, w_hz, preferred_element_type=jnp.float32)
        gh_n = jnp.dot(h, w_hn, preferred_element_type=jnp.float32)
        r = sigmoid(gi_r[lo:lo + B, :] + gh_r)
        z = sigmoid(gi_z[lo:lo + B, :] + gh_z)
        n = jnp.tanh(gi_n[lo:lo + B, :] + r * (gh_n + b_hn))
        h = (1.0 - z) * n + z * h

    # ---- FC + grouped softmax over tokens (lane-dense, exact division) ----
    logits = jnp.dot(h, w_fc, preferred_element_type=jnp.float32) + b_fc       # (B, out_dim)
    # Per-row max is a valid shift for every head's softmax (shift invariance per head).
    m = jnp.max(logits, axis=-1, keepdims=True)
    e = jnp.exp(logits - m)
    # Segment-indicator matmuls compute per-head sums and broadcast them back without any
    # in-kernel reshape / relayout of a (B, heads, tokens) intermediate.
    col = jax.lax.broadcasted_iota(jnp.int32, (out_dim, num_heads), 0)
    hd = jax.lax.broadcasted_iota(jnp.int32, (out_dim, num_heads), 1)
    seg = ((col >= hd * token_num) & (col < (hd + 1) * token_num)).astype(jnp.float32)
    colT = jax.lax.broadcasted_iota(jnp.int32, (num_heads, out_dim), 1)
    hdT = jax.lax.broadcasted_iota(jnp.int32, (num_heads, out_dim), 0)
    segT = ((colT >= hdT * token_num) & (colT < (hdT + 1) * token_num)).astype(jnp.float32)
    head_sums = jnp.dot(e, seg, preferred_element_type=jnp.float32)            # (B, heads)
    denom = jnp.dot(head_sums, segT, preferred_element_type=jnp.float32)       # (B, out_dim)
    out_ref[...] = (e / denom).astype(out_ref.dtype)


def prepare_params(params, num_heads, token_num):
    """One-time preprocessing: transpose to (in, out), fold biases, pack into 2 slabs.

    params uses the torch layout:
      gru_w_ih (3H, E), gru_w_hh (3H, H), gru_b_ih (3H,), gru_b_hh (3H,),
      fc_w (out_dim, H), fc_b (out_dim,)   with gate order (r, z, n).
    """
    f32 = jnp.float32
    w_ih, w_hh = params["gru_w_ih"].astype(f32), params["gru_w_hh"].astype(f32)
    b_ih, b_hh = params["gru_b_ih"].astype(f32), params["gru_b_hh"].astype(f32)
    w_fc, b_fc = params["fc_w"].astype(f32), params["fc_b"].astype(f32)
    H = w_hh.shape[1]
    E = w_ih.shape[1]
    out_dim = w_fc.shape[0]
    assert out_dim == num_heads * token_num

    blocks = [
        w_ih.T,            # (E, 3H)  hoisted input projection (all gates)
        w_hh[0:H, :].T,    # (H, H)   W_hr^T
        w_hh[H:2 * H, :].T,
        w_hh[2 * H:3 * H, :].T,
        w_fc.T,            # (H, out_dim)
    ]
    width = max(3 * H, H, out_dim)
    padded, offsets, row = [], [], 0
    for blk in blocks:
        blk = jnp.pad(blk, ((0, (-blk.shape[0]) % 8), (0, width - blk.shape[1])))
        offsets.append(row)
        padded.append(blk)
        row += blk.shape[0]
    w_slab = jnp.concatenate(padded, axis=0)                       # (rows, width) f32

    # Fold b_hr / b_hz into the hoisted input-projection bias; b_hn must stay inside the
    # r * (W_hn h + b_hn) term to match torch.nn.GRU exactly.
    b_gi = b_ih + jnp.concatenate([b_hh[:2 * H], jnp.zeros((H,), f32)])
    b_rows = [b_gi, b_hh[2 * H:3 * H], b_fc]
    b_slab = jnp.stack([jnp.pad(r_, (0, width - r_.shape[0])) for r_ in b_rows])  # (3, width)

    return {"w_slab": w_slab, "b_slab": b_slab,
            "offsets": tuple(int(o) for o in offsets), "dims": (E, H, out_dim)}


def tpcw_forward(inputs, prepared, num_heads, token_num):
    """inputs: (B, T, E) float32 -> (B, num_heads, token_num) float32."""
    B, T, E = inputs.shape
    _, H, out_dim = prepared["dims"]

    # Time-major flatten so one matmul projects all timesteps (single small XLA fusion).
    x_flat = jnp.transpose(inputs, (1, 0, 2)).reshape(T * B, E).astype(jnp.float32)

    kernel = functools.partial(
        _tpcw_kernel, batch=B, seq_len=T, embed=E, hidden=H,
        num_heads=num_heads, token_num=token_num, w_offsets=prepared["offsets"])

    vmem = lambda: pl.BlockSpec(memory_space=pltpu.MemorySpace.VMEM)
    out_flat = pl.pallas_call(
        kernel,
        out_shape=jax.ShapeDtypeStruct((B, out_dim), jnp.float32),
        in_specs=[vmem(), vmem(), vmem()],
        out_specs=vmem(),
    )(x_flat, prepared["w_slab"], prepared["b_slab"])

    # Free layout plumbing outside the kernel (kernel store stays lane-dense).
    return out_flat.reshape(B, num_heads, token_num)


def tpcw_reference(inputs, params, num_heads, token_num):
    """Pure-JAX f32 reference mirroring torch.nn.GRU + Linear + Softmax(dim=2)."""
    B, T, _ = inputs.shape
    w_ih, w_hh = params["gru_w_ih"], params["gru_w_hh"]
    b_ih, b_hh = params["gru_b_ih"], params["gru_b_hh"]
    H = w_hh.shape[1]
    h = jnp.zeros((B, H), jnp.float32)
    for t in range(T):
        gi = inputs[:, t, :] @ w_ih.T + b_ih
        gh = h @ w_hh.T + b_hh
        r = jax.nn.sigmoid(gi[:, :H] + gh[:, :H])
        z = jax.nn.sigmoid(gi[:, H:2 * H] + gh[:, H:2 * H])
        n = jnp.tanh(gi[:, 2 * H:] + r * gh[:, 2 * H:])
        h = (1.0 - z) * n + z * h
    logits = h @ params["fc_w"].T + params["fc_b"]
    return jax.nn.softmax(logits.reshape(B, num_heads, token_num), axis=-1)


def init_params(key, embedding_dim, hidden_dim, num_heads, token_num):
    """Deterministic synthetic parameters in the torch layout of the module."""
    ks = jax.random.split(key, 6)
    scale = 0.1
    out_dim = num_heads * token_num
    return {
        "gru_w_ih": scale * jax.random.normal(ks[0], (3 * hidden_dim, embedding_dim), jnp.float32),
        "gru_w_hh": scale * jax.random.normal(ks[1], (3 * hidden_dim, hidden_dim), jnp.float32),
        "gru_b_ih": scale * jax.random.normal(ks[2], (3 * hidden_dim,), jnp.float32),
        "gru_b_hh": scale * jax.random.normal(ks[3], (3 * hidden_dim,), jnp.float32),
        "fc_w": scale * jax.random.normal(ks[4], (out_dim, hidden_dim), jnp.float32),
        "fc_b": scale * jax.random.normal(ks[5], (out_dim,), jnp.float32),
    }


if __name__ == "__main__":
    # Small shapes consistent with the module's forward:
    # batch=2, max_seq_len=8, encoder_embedding_dim=32, gru_hidden=32, heads=4, tokens=8.
    B, T, E, H = 2, 8, 32, 32
    NUM_HEADS, TOKEN_NUM = 4, 8

    key = jax.random.PRNGKey(0)
    k_in, k_par = jax.random.split(key)
    inputs = jax.random.normal(k_in, (B, T, E), jnp.float32)
    params = init_params(k_par, E, H, NUM_HEADS, TOKEN_NUM)
    prepared = prepare_params(params, NUM_HEADS, TOKEN_NUM)   # one-time, off the hot path

    w = jax.block_until_ready(tpcw_forward(inputs, prepared, NUM_HEADS, TOKEN_NUM))

    assert w.shape == (B, NUM_HEADS, TOKEN_NUM), w.shape
    # Exact division in the softmax epilogue -> rows sum to 1 tightly.
    row_sums = jnp.sum(w, axis=-1)
    assert bool(jnp.all(jnp.abs(row_sums - 1.0) < 1e-5)), row_sums
    # All-f32 kernel vs pure-JAX f32 reference.
    ref = tpcw_reference(inputs, params, NUM_HEADS, TOKEN_NUM)
    max_err = jnp.max(jnp.abs(w - ref))
    assert bool(max_err < 2e-3), float(max_err)

    print("KERNEL_OK")
</pallas_src>

<mosaic_0001>
module attributes {stable_mosaic.version = 11 : i64} {
  func.func @_tpcw_kernel(%arg0: memref<16x32xf32, #tpu.memory_space<vmem>>, %arg1: memref<160x96xf32, #tpu.memory_space<vmem>>, %arg2: memref<3x96xf32, #tpu.memory_space<vmem>>, %arg3: memref<2x32xf32, #tpu.memory_space<vmem>>) attributes {dimension_semantics = [], scalar_prefetch = 0 : i64, scratch_operands = 0 : i64, tpu.core_type = #tpu.core_type<tc>} {
    %c0 = arith.constant 0 : index
    %c0_0 = arith.constant 0 : index
    %0 = vector.load %arg1[%c0, %c0_0] : memref<160x96xf32, #tpu.memory_space<vmem>>, vector<32x96xf32>
    %c32 = arith.constant 32 : index
    %c0_1 = arith.constant 0 : index
    %1 = vector.load %arg1[%c32, %c0_1] : memref<160x96xf32, #tpu.memory_space<vmem>>, vector<32x32xf32>
    %c64 = arith.constant 64 : index
    %c0_2 = arith.constant 0 : index
    %2 = vector.load %arg1[%c64, %c0_2] : memref<160x96xf32, #tpu.memory_space<vmem>>, vector<32x32xf32>
    %c96 = arith.constant 96 : index
    %c0_3 = arith.constant 0 : index
    %3 = vector.load %arg1[%c96, %c0_3] : memref<160x96xf32, #tpu.memory_space<vmem>>, vector<32x32xf32>
    %c128 = arith.constant 128 : index
    %c0_4 = arith.constant 0 : index
    %4 = vector.load %arg1[%c128, %c0_4] : memref<160x96xf32, #tpu.memory_space<vmem>>, vector<32x32xf32>
    %c0_5 = arith.constant 0 : index
    %c0_6 = arith.constant 0 : index
    %5 = vector.load %arg2[%c0_5, %c0_6] : memref<3x96xf32, #tpu.memory_space<vmem>>, vector<1x96xf32>
    %c1 = arith.constant 1 : index
    %c0_7 = arith.constant 0 : index
    %6 = vector.load %arg2[%c1, %c0_7] : memref<3x96xf32, #tpu.memory_space<vmem>>, vector<1x32xf32>
    %7 = vector.shape_cast %6 : vector<1x32xf32> to vector<1x32xf32>
    %8 = vector.broadcast %7 : vector<1x32xf32> to vector<2x32xf32>
    %c2 = arith.constant 2 : index
    %c0_8 = arith.constant 0 : index
    %9 = vector.load %arg2[%c2, %c0_8] : memref<3x96xf32, #tpu.memory_space<vmem>>, vector<1x32xf32>
    %c0_9 = arith.constant 0 : index
    %c0_10 = arith.constant 0 : index
    %10 = vector.load %arg0[%c0_9, %c0_10] : memref<16x32xf32, #tpu.memory_space<vmem>>, vector<16x32xf32>
    %cst = arith.constant dense<0.000000e+00> : vector<16x96xf32>
    %11 = tpu.matmul %10, %0, %cst {dimension_numbers = #tpu.dot_dimension_numbers<[1], [0], [0], [1], [0, 0, 1, 1], [], []>} : vector<16x32xf32>, vector<32x96xf32>, vector<16x96xf32> -> vector<16x96xf32>
    %12 = vector.broadcast %5 : vector<1x96xf32> to vector<16x96xf32>
    %13 = arith.addf %11, %12 : vector<16x96xf32>
    %14 = vector.extract_strided_slice %13 {offsets = [0, 0], sizes = [16, 32], strides = [1, 1]} : vector<16x96xf32> to vector<16x32xf32>
    %15 = vector.extract_strided_slice %13 {offsets = [0, 32], sizes = [16, 32], strides = [1, 1]} : vector<16x96xf32> to vector<16x32xf32>
    %16 = vector.extract_strided_slice %13 {offsets = [0, 64], sizes = [16, 32], strides = [1, 1]} : vector<16x96xf32> to vector<16x32xf32>
    %17 = vector.extract_strided_slice %14 {offsets = [0, 0], sizes = [2, 32], strides = [1, 1]} : vector<16x32xf32> to vector<2x32xf32>
    %cst_11 = arith.constant 5.000000e-01 : f32
    %18 = vector.broadcast %cst_11 : f32 to vector<2x32xf32>
    %19 = arith.mulf %18, %17 : vector<2x32xf32>
    %20 = math.tanh %19 : vector<2x32xf32>
    %cst_12 = arith.constant 1.000000e+00 : f32
    %21 = vector.broadcast %cst_12 : f32 to vector<2x32xf32>
    %22 = arith.addf %20, %21 : vector<2x32xf32>
    %cst_13 = arith.constant 5.000000e-01 : f32
    %23 = vector.broadcast %cst_13 : f32 to vector<2x32xf32>
    %24 = arith.mulf %23, %22 : vector<2x32xf32>
    %25 = vector.extract_strided_slice %15 {offsets = [0, 0], sizes = [2, 32], strides = [1, 1]} : vector<16x32xf32> to vector<2x32xf32>
    %cst_14 = arith.constant 5.000000e-01 : f32
    %26 = vector.broadcast %cst_14 : f32 to vector<2x32xf32>
    %27 = arith.mulf %26, %25 : vector<2x32xf32>
    %28 = math.tanh %27 : vector<2x32xf32>
    %cst_15 = arith.constant 1.000000e+00 : f32
    %29 = vector.broadcast %cst_15 : f32 to vector<2x32xf32>
    %30 = arith.addf %28, %29 : vector<2x32xf32>
    %cst_16 = arith.constant 5.000000e-01 : f32
    %31 = vector.broadcast %cst_16 : f32 to vector<2x32xf32>
    %32 = arith.mulf %31, %30 : vector<2x32xf32>
    %33 = vector.extract_strided_slice %16 {offsets = [0, 0], sizes = [2, 32], strides = [1, 1]} : vector<16x32xf32> to vector<2x32xf32>
    %34 = arith.mulf %24, %8 : vector<2x32xf32>
    %35 = arith.addf %33, %34 : vector<2x32xf32>
    %36 = math.tanh %35 : vector<2x32xf32>
    %cst_17 = arith.constant 1.000000e+00 : f32
    %37 = vector.broadcast %cst_17 : f32 to vector<2x32xf32>
    %38 = arith.subf %37, %32 : vector<2x32xf32>
    %39 = arith.mulf %38, %36 : vector<2x32xf32>
    %cst_18 = arith.constant dense<0.000000e+00> : vector<2x32xf32>
    %40 = tpu.matmul %39, %1, %cst_18 {dimension_numbers = #tpu.dot_dimension_numbers<[1], [0], [0], [1], [0, 0, 1, 1], [], []>} : vector<2x32xf32>, vector<32x32xf32>, vector<2x32xf32> -> vector<2x32xf32>
    %cst_19 = arith.constant dense<0.000000e+00> : vector<2x32xf32>
    %41 = tpu.matmul %39, %2, %cst_19 {dimension_numbers = #tpu.dot_dimension_numbers<[1], [0], [0], [1], [0, 0, 1, 1], [], []>} : vector<2x32xf32>, vector<32x32xf32>, vector<2x32xf32> -> vector<2x32xf32>
    %cst_20 = arith.constant dense<0.000000e+00> : vector<2x32xf32>
    %42 = tpu.matmul %39, %3, %cst_20 {dimension_numbers = #tpu.dot_dimension_numbers<[1], [0], [0], [1], [0, 0, 1, 1], [], []>} : vector<2x32xf32>, vector<32x32xf32>, vector<2x32xf32> -> vector<2x32xf32>
    %43 = vector.extract_strided_slice %14 {offsets = [2, 0], sizes = [2, 32], strides = [1, 1]} : vector<16x32xf32> to vector<2x32xf32>
    %44 = arith.addf %43, %40 : vector<2x32xf32>
    %cst_21 = arith.constant 5.000000e-01 : f32
    %45 = vector.broadcast %cst_21 : f32 to vector<2x32xf32>
    %46 = arith.mulf %45, %44 : vector<2x32xf32>
    %47 = math.tanh %46 : vector<2x32xf32>
    %cst_22 = arith.constant 1.000000e+00 : f32
    %48 = vector.broadcast %cst_22 : f32 to vector<2x32xf32>
    %49 = arith.addf %47, %48 : vector<2x32xf32>
    %cst_23 = arith.constant 5.000000e-01 : f32
    %50 = vector.broadcast %cst_23 : f32 to vector<2x32xf32>
    %51 = arith.mulf %50, %49 : vector<2x32xf32>
    %52 = vector.extract_strided_slice %15 {offsets = [2, 0], sizes = [2, 32], strides = [1, 1]} : vector<16x32xf32> to vector<2x32xf32>
    %53 = arith.addf %52, %41 : vector<2x32xf32>
    %cst_24 = arith.constant 5.000000e-01 : f32
    %54 = vector.broadcast %cst_24 : f32 to vector<2x32xf32>
    %55 = arith.mulf %54, %53 : vector<2x32xf32>
    %56 = math.tanh %55 : vector<2x32xf32>
    %cst_25 = arith.constant 1.000000e+00 : f32
    %57 = vector.broadcast %cst_25 : f32 to vector<2x32xf32>
    %58 = arith.addf %56, %57 : vector<2x32xf32>
    %cst_26 = arith.constant 5.000000e-01 : f32
    %59 = vector.broadcast %cst_26 : f32 to vector<2x32xf32>
    %60 = arith.mulf %59, %58 : vector<2x32xf32>
    %61 = vector.extract_strided_slice %16 {offsets = [2, 0], sizes = [2, 32], strides = [1, 1]} : vector<16x32xf32> to vector<2x32xf32>
    %62 = arith.addf %42, %8 : vector<2x32xf32>
    %63 = arith.mulf %51, %62 : vector<2x32xf32>
    %64 = arith.addf %61, %63 : vector<2x32xf32>
    %65 = math.tanh %64 : vector<2x32xf32>
    %cst_27 = arith.constant 1.000000e+00 : f32
    %66 = vector.broadcast %cst_27 : f32 to vector<2x32xf32>
    %67 = arith.subf %66, %60 : vector<2x32xf32>
    %68 = arith.mulf %67, %65 : vector<2x32xf32>
    %69 = arith.mulf %60, %39 : vector<2x32xf32>
    %70 = arith.addf %68, %69 : vector<2x32xf32>
    %cst_28 = arith.constant dense<0.000000e+00> : vector<2x32xf32>
    %71 = tpu.matmul %70, %1, %cst_28 {dimension_numbers = #tpu.dot_dimension_numbers<[1], [0], [0], [1], [0, 0, 1, 1], [], []>} : vector<2x32xf32>, vector<32x32xf32>, vector<2x32xf32> -> vector<2x32xf32>
    %cst_29 = arith.constant dense<0.000000e+00> : vector<2x32xf32>
    %72 = tpu.matmul %70, %2, %cst_29 {dimension_numbers = #tpu.dot_dimension_numbers<[1], [0], [0], [1], [0, 0, 1, 1], [], []>} : vector<2x32xf32>, vector<32x32xf32>, vector<2x32xf32> -> vector<2x32xf32>
    %cst_30 = arith.constant dense<0.000000e+00> : vector<2x32xf32>
    %73 = tpu.matmul %70, %3, %cst_30 {dimension_numbers = #tpu.dot_dimension_numbers<[1], [0], [0], [1], [0, 0, 1, 1], [], []>} : vector<2x32xf32>, vector<32x32xf32>, vector<2x32xf32> -> vector<2x32xf32>
    %74 = vector.extract_strided_slice %14 {offsets = [4, 0], sizes = [2, 32], strides = [1, 1]} : vector<16x32xf32> to vector<2x32xf32>
    %75 = arith.addf %74, %71 : vector<2x32xf32>
    %cst_31 = arith.constant 5.000000e-01 : f32
    %76 = vector.broadcast %cst_31 : f32 to vector<2x32xf32>
    %77 = arith.mulf %76, %75 : vector<2x32xf32>
    %78 = math.tanh %77 : vector<2x32xf32>
    %cst_32 = arith.constant 1.000000e+00 : f32
    %79 = vector.broadcast %cst_32 : f32 to vector<2x32xf32>
    %80 = arith.addf %78, %79 : vector<2x32xf32>
    %cst_33 = arith.constant 5.000000e-01 : f32
    %81 = vector.broadcast %cst_33 : f32 to vector<2x32xf32>
    %82 = arith.mulf %81, %80 : vector<2x32xf32>
    %83 = vector.extract_strided_slice %15 {offsets = [4, 0], sizes = [2, 32], strides = [1, 1]} : vector<16x32xf32> to vector<2x32xf32>
    %84 = arith.addf %83, %72 : vector<2x32xf32>
    %cst_34 = arith.constant 5.000000e-01 : f32
    %85 = vector.broadcast %cst_34 : f32 to vector<2x32xf32>
    %86 = arith.mulf %85, %84 : vector<2x32xf32>
    %87 = math.tanh %86 : vector<2x32xf32>
    %cst_35 = arith.constant 1.000000e+00 : f32
    %88 = vector.broadcast %cst_35 : f32 to vector<2x32xf32>
    %89 = arith.addf %87, %88 : vector<2x32xf32>
    %cst_36 = arith.constant 5.000000e-01 : f32
    %90 = vector.broadcast %cst_36 : f32 to vector<2x32xf32>
    %91 = arith.mulf %90, %89 : vector<2x32xf32>
    %92 = vector.extract_strided_slice %16 {offsets = [4, 0], sizes = [2, 32], strides = [1, 1]} : vector<16x32xf32> to vector<2x32xf32>
    %93 = arith.addf %73, %8 : vector<2x32xf32>
    %94 = arith.mulf %82, %93 : vector<2x32xf32>
    %95 = arith.addf %92, %94 : vector<2x32xf32>
    %96 = math.tanh %95 : vector<2x32xf32>
    %cst_37 = arith.constant 1.000000e+00 : f32
    %97 = vector.broadcast %cst_37 : f32 to vector<2x32xf32>
    %98 = arith.subf %97, %91 : vector<2x32xf32>
    %99 = arith.mulf %98, %96 : vector<2x32xf32>
    %100 = arith.mulf %91, %70 : vector<2x32xf32>
    %101 = arith.addf %99, %100 : vector<2x32xf32>
    %cst_38 = arith.constant dense<0.000000e+00> : vector<2x32xf32>
    %102 = tpu.matmul %101, %1, %cst_38 {dimension_numbers = #tpu.dot_dimension_numbers<[1], [0], [0], [1], [0, 0, 1, 1], [], []>} : vector<2x32xf32>, vector<32x32xf32>, vector<2x32xf32> -> vector<2x32xf32>
    %cst_39 = arith.constant dense<0.000000e+00> : vector<2x32xf32>
    %103 = tpu.matmul %101, %2, %cst_39 {dimension_numbers = #tpu.dot_dimension_numbers<[1], [0], [0], [1], [0, 0, 1, 1], [], []>} : vector<2x32xf32>, vector<32x32xf32>, vector<2x32xf32> -> vector<2x32xf32>
    %cst_40 = arith.constant dense<0.000000e+00> : vector<2x32xf32>
    %104 = tpu.matmul %101, %3, %cst_40 {dimension_numbers = #tpu.dot_dimension_numbers<[1], [0], [0], [1], [0, 0, 1, 1], [], []>} : vector<2x32xf32>, vector<32x32xf32>, vector<2x32xf32> -> vector<2x32xf32>
    %105 = vector.extract_strided_slice %14 {offsets = [6, 0], sizes = [2, 32], strides = [1, 1]} : vector<16x32xf32> to vector<2x32xf32>
    %106 = arith.addf %105, %102 : vector<2x32xf32>
    %cst_41 = arith.constant 5.000000e-01 : f32
    %107 = vector.broadcast %cst_41 : f32 to vector<2x32xf32>
    %108 = arith.mulf %107, %106 : vector<2x32xf32>
    %109 = math.tanh %108 : vector<2x32xf32>
    %cst_42 = arith.constant 1.000000e+00 : f32
    %110 = vector.broadcast %cst_42 : f32 to vector<2x32xf32>
    %111 = arith.addf %109, %110 : vector<2x32xf32>
    %cst_43 = arith.constant 5.000000e-01 : f32
    %112 = vector.broadcast %cst_43 : f32 to vector<2x32xf32>
    %113 = arith.mulf %112, %111 : vector<2x32xf32>
    %114 = vector.extract_strided_slice %15 {offsets = [6, 0], sizes = [2, 32], strides = [1, 1]} : vector<16x32xf32> to vector<2x32xf32>
    %115 = arith.addf %114, %103 : vector<2x32xf32>
    %cst_44 = arith.constant 5.000000e-01 : f32
    %116 = vector.broadcast %cst_44 : f32 to vector<2x32xf32>
    %117 = arith.mulf %116, %115 : vector<2x32xf32>
    %118 = math.tanh %117 : vector<2x32xf32>
    %cst_45 = arith.constant 1.000000e+00 : f32
    %119 = vector.broadcast %cst_45 : f32 to vector<2x32xf32>
    %120 = arith.addf %118, %119 : vector<2x32xf32>
    %cst_46 = arith.constant 5.000000e-01 : f32
    %121 = vector.broadcast %cst_46 : f32 to vector<2x32xf32>
    %122 = arith.mulf %121, %120 : vector<2x32xf32>
    %123 = vector.extract_strided_slice %16 {offsets = [6, 0], sizes = [2, 32], strides = [1, 1]} : vector<16x32xf32> to vector<2x32xf32>
    %124 = arith.addf %104, %8 : vector<2x32xf32>
    %125 = arith.mulf %113, %124 : vector<2x32xf32>
    %126 = arith.addf %123, %125 : vector<2x32xf32>
    %127 = math.tanh %126 : vector<2x32xf32>
    %cst_47 = arith.constant 1.000000e+00 : f32
    %128 = vector.broadcast %cst_47 : f32 to vector<2x32xf32>
    %129 = arith.subf %128, %122 : vector<2x32xf32>
    %130 = arith.mulf %129, %127 : vector<2x32xf32>
    %131 = arith.mulf %122, %101 : vector<2x32xf32>
    %132 = arith.addf %130, %131 : vector<2x32xf32>
    %cst_48 = arith.constant dense<0.000000e+00> : vector<2x32xf32>
    %133 = tpu.matmul %132, %1, %cst_48 {dimension_numbers = #tpu.dot_dimension_numbers<[1], [0], [0], [1], [0, 0, 1, 1], [], []>} : vector<2x32xf32>, vector<32x32xf32>, vector<2x32xf32> -> vector<2x32xf32>
    %cst_49 = arith.constant dense<0.000000e+00> : vector<2x32xf32>
    %134 = tpu.matmul %132, %2, %cst_49 {dimension_numbers = #tpu.dot_dimension_numbers<[1], [0], [0], [1], [0, 0, 1, 1], [], []>} : vector<2x32xf32>, vector<32x32xf32>, vector<2x32xf32> -> vector<2x32xf32>
    %cst_50 = arith.constant dense<0.000000e+00> : vector<2x32xf32>
    %135 = tpu.matmul %132, %3, %cst_50 {dimension_numbers = #tpu.dot_dimension_numbers<[1], [0], [0], [1], [0, 0, 1, 1], [], []>} : vector<2x32xf32>, vector<32x32xf32>, vector<2x32xf32> -> vector<2x32xf32>
    %136 = vector.extract_strided_slice %14 {offsets = [8, 0], sizes = [2, 32], strides = [1, 1]} : vector<16x32xf32> to vector<2x32xf32>
    %137 = arith.addf %136, %133 : vector<2x32xf32>
    %cst_51 = arith.constant 5.000000e-01 : f32
    %138 = vector.broadcast %cst_51 : f32 to vector<2x32xf32>
    %139 = arith.mulf %138, %137 : vector<2x32xf32>
    %140 = math.tanh %139 : vector<2x32xf32>
    %cst_52 = arith.constant 1.000000e+00 : f32
    %141 = vector.broadcast %cst_52 : f32 to vector<2x32xf32>
    %142 = arith.addf %140, %141 : vector<2x32xf32>
    %cst_53 = arith.constant 5.000000e-01 : f32
    %143 = vector.broadcast %cst_53 : f32 to vector<2x32xf32>
    %144 = arith.mulf %143, %142 : vector<2x32xf32>
    %145 = vector.extract_strided_slice %15 {offsets = [8, 0], sizes = [2, 32], strides = [1, 1]} : vector<16x32xf32> to vector<2x32xf32>
    %146 = arith.addf %145, %134 : vector<2x32xf32>
    %cst_54 = arith.constant 5.000000e-01 : f32
    %147 = vector.broadcast %cst_54 : f32 to vector<2x32xf32>
    %148 = arith.mulf %147, %146 : vector<2x32xf32>
    %149 = math.tanh %148 : vector<2x32xf32>
    %cst_55 = arith.constant 1.000000e+00 : f32
    %150 = vector.broadcast %cst_55 : f32 to vector<2x32xf32>
    %151 = arith.addf %149, %150 : vector<2x32xf32>
    %cst_56 = arith.constant 5.000000e-01 : f32
    %152 = vector.broadcast %cst_56 : f32 to vector<2x32xf32>
    %153 = arith.mulf %152, %151 : vector<2x32xf32>
    %154 = vector.extract_strided_slice %16 {offsets = [8, 0], sizes = [2, 32], strides = [1, 1]} : vector<16x32xf32> to vector<2x32xf32>
    %155 = arith.addf %135, %8 : vector<2x32xf32>
    %156 = arith.mulf %144, %155 : vector<2x32xf32>
    %157 = arith.addf %154, %156 : vector<2x32xf32>
    %158 = math.tanh %157 : vector<2x32xf32>
    %cst_57 = arith.constant 1.000000e+00 : f32
    %159 = vector.broadcast %cst_57 : f32 to vector<2x32xf32>
    %160 = arith.subf %159, %153 : vector<2x32xf32>
    %161 = arith.mulf %160, %158 : vector<2x32xf32>
    %162 = arith.mulf %153, %132 : vector<2x32xf32>
    %163 = arith.addf %161, %162 : vector<2x32xf32>
    %cst_58 = arith.constant dense<0.000000e+00> : vector<2x32xf32>
    %164 = tpu.matmul %163, %1, %cst_58 {dimension_numbers = #tpu.dot_dimension_numbers<[1], [0], [0], [1], [0, 0, 1, 1], [], []>} : vector<2x32xf32>, vector<32x32xf32>, vector<2x32xf32> -> vector<2x32xf32>
    %cst_59 = arith.constant dense<0.000000e+00> : vector<2x32xf32>
    %165 = tpu.matmul %163, %2, %cst_59 {dimension_numbers = #tpu.dot_dimension_numbers<[1], [0], [0], [1], [0, 0, 1, 1], [], []>} : vector<2x32xf32>, vector<32x32xf32>, vector<2x32xf32> -> vector<2x32xf32>
    %cst_60 = arith.constant dense<0.000000e+00> : vector<2x32xf32>
    %166 = tpu.matmul %163, %3, %cst_60 {dimension_numbers = #tpu.dot_dimension_numbers<[1], [0], [0], [1], [0, 0, 1, 1], [], []>} : vector<2x32xf32>, vector<32x32xf32>, vector<2x32xf32> -> vector<2x32xf32>
    %167 = vector.extract_strided_slice %14 {offsets = [10, 0], sizes = [2, 32], strides = [1, 1]} : vector<16x32xf32> to vector<2x32xf32>
    %168 = arith.addf %167, %164 : vector<2x32xf32>
    %cst_61 = arith.constant 5.000000e-01 : f32
    %169 = vector.broadcast %cst_61 : f32 to vector<2x32xf32>
    %170 = arith.mulf %169, %168 : vector<2x32xf32>
    %171 = math.tanh %170 : vector<2x32xf32>
    %cst_62 = arith.constant 1.000000e+00 : f32
    %172 = vector.broadcast %cst_62 : f32 to vector<2x32xf32>
    %173 = arith.addf %171, %172 : vector<2x32xf32>
    %cst_63 = arith.constant 5.000000e-01 : f32
    %174 = vector.broadcast %cst_63 : f32 to vector<2x32xf32>
    %175 = arith.mulf %174, %173 : vector<2x32xf32>
    %176 = vector.extract_strided_slice %15 {offsets = [10, 0], sizes = [2, 32], strides = [1, 1]} : vector<16x32xf32> to vector<2x32xf32>
    %177 = arith.addf %176, %165 : vector<2x32xf32>
    %cst_64 = arith.constant 5.000000e-01 : f32
    %178 = vector.broadcast %cst_64 : f32 to vector<2x32xf32>
    %179 = arith.mulf %178, %177 : vector<2x32xf32>
    %180 = math.tanh %179 : vector<2x32xf32>
    %cst_65 = arith.constant 1.000000e+00 : f32
    %181 = vector.broadcast %cst_65 : f32 to vector<2x32xf32>
    %182 = arith.addf %180, %181 : vector<2x32xf32>
    %cst_66 = arith.constant 5.000000e-01 : f32
    %183 = vector.broadcast %cst_66 : f32 to vector<2x32xf32>
    %184 = arith.mulf %183, %182 : vector<2x32xf32>
    %185 = vector.extract_strided_slice %16 {offsets = [10, 0], sizes = [2, 32], strides = [1, 1]} : vector<16x32xf32> to vector<2x32xf32>
    %186 = arith.addf %166, %8 : vector<2x32xf32>
    %187 = arith.mulf %175, %186 : vector<2x32xf32>
    %188 = arith.addf %185, %187 : vector<2x32xf32>
    %189 = math.tanh %188 : vector<2x32xf32>
    %cst_67 = arith.constant 1.000000e+00 : f32
    %190 = vector.broadcast %cst_67 : f32 to vector<2x32xf32>
    %191 = arith.subf %190, %184 : vector<2x32xf32>
    %192 = arith.mulf %191, %189 : vector<2x32xf32>
    %193 = arith.mulf %184, %163 : vector<2x32xf32>
    %194 = arith.addf %192, %193 : vector<2x32xf32>
    %cst_68 = arith.constant dense<0.000000e+00> : vector<2x32xf32>
    %195 = tpu.matmul %194, %1, %cst_68 {dimension_numbers = #tpu.dot_dimension_numbers<[1], [0], [0], [1], [0, 0, 1, 1], [], []>} : vector<2x32xf32>, vector<32x32xf32>, vector<2x32xf32> -> vector<2x32xf32>
    %cst_69 = arith.constant dense<0.000000e+00> : vector<2x32xf32>
    %196 = tpu.matmul %194, %2, %cst_69 {dimension_numbers = #tpu.dot_dimension_numbers<[1], [0], [0], [1], [0, 0, 1, 1], [], []>} : vector<2x32xf32>, vector<32x32xf32>, vector<2x32xf32> -> vector<2x32xf32>
    %cst_70 = arith.constant dense<0.000000e+00> : vector<2x32xf32>
    %197 = tpu.matmul %194, %3, %cst_70 {dimension_numbers = #tpu.dot_dimension_numbers<[1], [0], [0], [1], [0, 0, 1, 1], [], []>} : vector<2x32xf32>, vector<32x32xf32>, vector<2x32xf32> -> vector<2x32xf32>
    %198 = vector.extract_strided_slice %14 {offsets = [12, 0], sizes = [2, 32], strides = [1, 1]} : vector<16x32xf32> to vector<2x32xf32>
    %199 = arith.addf %198, %195 : vector<2x32xf32>
    %cst_71 = arith.constant 5.000000e-01 : f32
    %200 = vector.broadcast %cst_71 : f32 to vector<2x32xf32>
    %201 = arith.mulf %200, %199 : vector<2x32xf32>
    %202 = math.tanh %201 : vector<2x32xf32>
    %cst_72 = arith.constant 1.000000e+00 : f32
    %203 = vector.broadcast %cst_72 : f32 to vector<2x32xf32>
    %204 = arith.addf %202, %203 : vector<2x32xf32>
    %cst_73 = arith.constant 5.000000e-01 : f32
    %205 = vector.broadcast %cst_73 : f32 to vector<2x32xf32>
    %206 = arith.mulf %205, %204 : vector<2x32xf32>
    %207 = vector.extract_strided_slice %15 {offsets = [12, 0], sizes = [2, 32], strides = [1, 1]} : vector<16x32xf32> to vector<2x32xf32>
    %208 = arith.addf %207, %196 : vector<2x32xf32>
    %cst_74 = arith.constant 5.000000e-01 : f32
    %209 = vector.broadcast %cst_74 : f32 to vector<2x32xf32>
    %210 = arith.mulf %209, %208 : vector<2x32xf32>
    %211 = math.tanh %210 : vector<2x32xf32>
    %cst_75 = arith.constant 1.000000e+00 : f32
    %212 = vector.broadcast %cst_75 : f32 to vector<2x32xf32>
    %213 = arith.addf %211, %212 : vector<2x32xf32>
    %cst_76 = arith.constant 5.000000e-01 : f32
    %214 = vector.broadcast %cst_76 : f32 to vector<2x32xf32>
    %215 = arith.mulf %214, %213 : vector<2x32xf32>
    %216 = vector.extract_strided_slice %16 {offsets = [12, 0], sizes = [2, 32], strides = [1, 1]} : vector<16x32xf32> to vector<2x32xf32>
    %217 = arith.addf %197, %8 : vector<2x32xf32>
    %218 = arith.mulf %206, %217 : vector<2x32xf32>
    %219 = arith.addf %216, %218 : vector<2x32xf32>
    %220 = math.tanh %219 : vector<2x32xf32>
    %cst_77 = arith.constant 1.000000e+00 : f32
    %221 = vector.broadcast %cst_77 : f32 to vector<2x32xf32>
    %222 = arith.subf %221, %215 : vector<2x32xf32>
    %223 = arith.mulf %222, %220 : vector<2x32xf32>
    %224 = arith.mulf %215, %194 : vector<2x32xf32>
    %225 = arith.addf %223, %224 : vector<2x32xf32>
    %cst_78 = arith.constant dense<0.000000e+00> : vector<2x32xf32>
    %226 = tpu.matmul %225, %1, %cst_78 {dimension_numbers = #tpu.dot_dimension_numbers<[1], [0], [0], [1], [0, 0, 1, 1], [], []>} : vector<2x32xf32>, vector<32x32xf32>, vector<2x32xf32> -> vector<2x32xf32>
    %cst_79 = arith.constant dense<0.000000e+00> : vector<2x32xf32>
    %227 = tpu.matmul %225, %2, %cst_79 {dimension_numbers = #tpu.dot_dimension_numbers<[1], [0], [0], [1], [0, 0, 1, 1], [], []>} : vector<2x32xf32>, vector<32x32xf32>, vector<2x32xf32> -> vector<2x32xf32>
    %cst_80 = arith.constant dense<0.000000e+00> : vector<2x32xf32>
    %228 = tpu.matmul %225, %3, %cst_80 {dimension_numbers = #tpu.dot_dimension_numbers<[1], [0], [0], [1], [0, 0, 1, 1], [], []>} : vector<2x32xf32>, vector<32x32xf32>, vector<2x32xf32> -> vector<2x32xf32>
    %229 = vector.extract_strided_slice %14 {offsets = [14, 0], sizes = [2, 32], strides = [1, 1]} : vector<16x32xf32> to vector<2x32xf32>
    %230 = arith.addf %229, %226 : vector<2x32xf32>
    %cst_81 = arith.constant 5.000000e-01 : f32
    %231 = vector.broadcast %cst_81 : f32 to vector<2x32xf32>
    %232 = arith.mulf %231, %230 : vector<2x32xf32>
    %233 = math.tanh %232 : vector<2x32xf32>
    %cst_82 = arith.constant 1.000000e+00 : f32
    %234 = vector.broadcast %cst_82 : f32 to vector<2x32xf32>
    %235 = arith.addf %233, %234 : vector<2x32xf32>
    %cst_83 = arith.constant 5.000000e-01 : f32
    %236 = vector.broadcast %cst_83 : f32 to vector<2x32xf32>
    %237 = arith.mulf %236, %235 : vector<2x32xf32>
    %238 = vector.extract_strided_slice %15 {offsets = [14, 0], sizes = [2, 32], strides = [1, 1]} : vector<16x32xf32> to vector<2x32xf32>
    %239 = arith.addf %238, %227 : vector<2x32xf32>
    %cst_84 = arith.constant 5.000000e-01 : f32
    %240 = vector.broadcast %cst_84 : f32 to vector<2x32xf32>
    %241 = arith.mulf %240, %239 : vector<2x32xf32>
    %242 = math.tanh %241 : vector<2x32xf32>
    %cst_85 = arith.constant 1.000000e+00 : f32
    %243 = vector.broadcast %cst_85 : f32 to vector<2x32xf32>
    %244 = arith.addf %242, %243 : vector<2x32xf32>
    %cst_86 = arith.constant 5.000000e-01 : f32
    %245 = vector.broadcast %cst_86 : f32 to vector<2x32xf32>
    %246 = arith.mulf %245, %244 : vector<2x32xf32>
    %247 = vector.extract_strided_slice %16 {offsets = [14, 0], sizes = [2, 32], strides = [1, 1]} : vector<16x32xf32> to vector<2x32xf32>
    %248 = arith.addf %228, %8 : vector<2x32xf32>
    %249 = arith.mulf %237, %248 : vector<2x32xf32>
    %250 = arith.addf %247, %249 : vector<2x32xf32>
    %251 = math.tanh %250 : vector<2x32xf32>
    %cst_87 = arith.constant 1.000000e+00 : f32
    %252 = vector.broadcast %cst_87 : f32 to vector<2x32xf32>
    %253 = arith.subf %252, %246 : vector<2x32xf32>
    %254 = arith.mulf %253, %251 : vector<2x32xf32>
    %255 = arith.mulf %246, %225 : vector<2x32xf32>
    %256 = arith.addf %254, %255 : vector<2x32xf32>
    %cst_88 = arith.constant dense<0.000000e+00> : vector<2x32xf32>
    %257 = tpu.matmul %256, %4, %cst_88 {dimension_numbers = #tpu.dot_dimension_numbers<[1], [0], [0], [1], [0, 0, 1, 1], [], []>} : vector<2x32xf32>, vector<32x32xf32>, vector<2x32xf32> -> vector<2x32xf32>
    %258 = vector.broadcast %9 : vector<1x32xf32> to vector<2x32xf32>
    %259 = arith.addf %257, %258 : vector<2x32xf32>
    %cst_89 = arith.constant dense<0xFF800000> : vector<2xf32>
    %260 = vector.multi_reduction <maximumf>, %259, %cst_89 [1] : vector<2x32xf32> to vector<2xf32>
    %261 = vector.shape_cast %260 : vector<2xf32> to vector<2x1xf32>
    %262 = vector.broadcast %261 : vector<2x1xf32> to vector<2x32xf32>
    %263 = arith.subf %259, %262 : vector<2x32xf32>
    %264 = math.exp %263 : vector<2x32xf32>
    %265 = tpu.iota {dimensions = array<i32: 0>} : vector<32x4xi32>
    %266 = tpu.iota {dimensions = array<i32: 1>} : vector<32x4xi32>
    %c8_i32 = arith.constant 8 : i32
    %267 = vector.broadcast %c8_i32 : i32 to vector<32x4xi32>
    %268 = arith.muli %266, %267 : vector<32x4xi32>
    %269 = arith.cmpi sge, %265, %268 : vector<32x4xi32>
    %c1_i32 = arith.constant 1 : i32
    %270 = vector.broadcast %c1_i32 : i32 to vector<32x4xi32>
    %271 = arith.addi %266, %270 : vector<32x4xi32>
    %c8_i32_90 = arith.constant 8 : i32
    %272 = vector.broadcast %c8_i32_90 : i32 to vector<32x4xi32>
    %273 = arith.muli %271, %272 : vector<32x4xi32>
    %274 = arith.cmpi slt, %265, %273 : vector<32x4xi32>
    %275 = arith.andi %269, %274 : vector<32x4xi1>
    %276 = arith.extui %275 : vector<32x4xi1> to vector<32x4xi32>
    %277 = arith.sitofp %276 : vector<32x4xi32> to vector<32x4xf32>
    %278 = tpu.iota {dimensions = array<i32: 1>} : vector<4x32xi32>
    %279 = tpu.iota {dimensions = array<i32: 0>} : vector<4x32xi32>
    %c8_i32_91 = arith.constant 8 : i32
    %280 = vector.broadcast %c8_i32_91 : i32 to vector<4x32xi32>
    %281 = arith.muli %279, %280 : vector<4x32xi32>
    %282 = arith.cmpi sge, %278, %281 : vector<4x32xi32>
    %c1_i32_92 = arith.constant 1 : i32
    %283 = vector.broadcast %c1_i32_92 : i32 to vector<4x32xi32>
    %284 = arith.addi %279, %283 : vector<4x32xi32>
    %c8_i32_93 = arith.constant 8 : i32
    %285 = vector.broadcast %c8_i32_93 : i32 to vector<4x32xi32>
    %286 = arith.muli %284, %285 : vector<4x32xi32>
    %287 = arith.cmpi slt, %278, %286 : vector<4x32xi32>
    %288 = arith.andi %282, %287 : vector<4x32xi1>
    %289 = arith.extui %288 : vector<4x32xi1> to vector<4x32xi32>
    %290 = arith.sitofp %289 : vector<4x32xi32> to vector<4x32xf32>
    %cst_94 = arith.constant dense<0.000000e+00> : vector<2x4xf32>
    %291 = tpu.matmul %264, %277, %cst_94 {dimension_numbers = #tpu.dot_dimension_numbers<[1], [0], [0], [1], [0, 0, 1, 1], [], []>} : vector<2x32xf32>, vector<32x4xf32>, vector<2x4xf32> -> vector<2x4xf32>
    %cst_95 = arith.constant dense<0.000000e+00> : vector<2x32xf32>
    %292 = tpu.matmul %291, %290, %cst_95 {dimension_numbers = #tpu.dot_dimension_numbers<[1], [0], [0], [1], [0, 0, 1, 1], [], []>} : vector<2x4xf32>, vector<4x32xf32>, vector<2x32xf32> -> vector<2x32xf32>
    %293 = arith.divf %264, %292 : vector<2x32xf32>
    %c0_96 = arith.constant 0 : index
    %c0_97 = arith.constant 0 : index
    %294 = vector.load %arg3[%c0_96, %c0_97] : memref<2x32xf32, #tpu.memory_space<vmem>>, vector<2x32xf32>
    tpu.vector_store %arg3[%c0_96, %c0_97], %293 {strides = array<i32>} : memref<2x32xf32, #tpu.memory_space<vmem>>, vector<2x32xf32>,
    return
  }
}

</mosaic_0001>

<llo_original>
// kernel: tpu_custom_call.1
$region0: #{tpu_custom_call.1}
  #allocation0 [shape = 'u32[]', space=smem, size = 0x4, offset = 0x4, fixed_abs, tag = 'smem constant byte address 0x4 - core index']
  #allocation1 [shape = 'u32[144,128]{1,0:T(1,128)}', space=vmem, size = 0x12000, scoped, tag = 'internal scratch']
  %s0 = inlined_call_operand.hbm [shape: f32[16,32], index: 0, kind: input, shape index: {}]
  %s1 = inlined_call_operand.hbm [shape: f32[160,96], index: 1, kind: input, shape index: {}]
  %s2 = inlined_call_operand.hbm [shape: f32[3,96], index: 2, kind: input, shape index: {}]
  %s3 = inlined_call_operand.hbm [shape: f32[2,32], index: 3, kind: output, shape index: {}]
  %s4 = sld [smem:[#allocation0]]
  $region34: #{tpu_custom_call.1} parent=0
    _
  %s6 = ssub.s32 1, %s4
  %s7 = scalar_select 0, %s6, %s4
  $region1: #{tpu_custom_call.1} parent=0
    #allocation2 [shape = 'u8[8192]{0}', space=vmem, size = 0x2000, scoped, tag = 'input window, operand 0, single buffered']
    #allocation3 [shape = 's32[1]{0}', space=sflag, size = 0x4, scoped, tag = 'scoped memory for tpu_custom_call.1']
    #allocation4 [shape = 's32[1]{0}', space=sflag, size = 0x4, scoped, tag = 'scoped memory for tpu_custom_call.1']
    #allocation5 [shape = 'u8[81920]{0}', space=vmem, size = 0x14000, scoped, tag = 'input window, operand 1, single buffered']
    #allocation6 [shape = 's32[1]{0}', space=sflag, size = 0x4, scoped, tag = 'scoped memory for tpu_custom_call.1']
    #allocation7 [shape = 'u8[2048]{0}', space=vmem, size = 0x800, scoped, tag = 'input window, operand 2, single buffered']
    #allocation8 [shape = 'u8[1024]{0}', space=vmem, size = 0x400, scoped, tag = 'output window, operand 0, single buffered']
    %8 = vsyncpa [#allocation3], 0
    %9 = vsyncpa [#allocation6], 0
    %10 = vsyncpa [#allocation4], 0
    // Predicated region
    $region2: #{tpu_custom_call.1} parent=1 // pred_check
      _
    $region3: #{tpu_custom_call.1} parent=1 // pred_check_branch
      %12 = sbr.rel (0) target = $region5
    $region4: #{tpu_custom_call.1} parent=1 // pred_region
      %s14 = ssub.s32 256, 256
      %15 = vsyncadd [#allocation3], %s14
      %s16 = sshll.u32 [#allocation2], 4
      %s17 = int_to_ptr.vmem [resolvable:$true] %s16
      %22 = dma.hbm_to_vmem [thread:$0]  %s0, 256, %s17, [#allocation3], 128, 128, 8
    $region5: #{tpu_custom_call.1} parent=1 // pred_fallthru
      _
    // Predicated region
    $region6: #{tpu_custom_call.1} parent=1 // pred_check
      _
    $region7: #{tpu_custom_call.1} parent=1 // pred_check_branch
      %24 = sbr.rel (0) target = $region9
    $region8: #{tpu_custom_call.1} parent=1 // pred_region
      %s26 = ssub.s32 2560, 2560
      %27 = vsyncadd [#allocation6], %s26
      %s28 = sshll.u32 [#allocation5], 4
      %s29 = int_to_ptr.vmem [resolvable:$true] %s28
      %34 = dma.hbm_to_vmem [thread:$0]  %s1, 2560, %s29, [#allocation6], 128, 128, 8
    $region9: #{tpu_custom_call.1} parent=1 // pred_fallthru
      _
    // Predicated region
    $region10: #{tpu_custom_call.1} parent=1 // pred_check
      _
    $region11: #{tpu_custom_call.1} parent=1 // pred_check_branch
      %36 = sbr.rel (0) target = $region13
    $region12: #{tpu_custom_call.1} parent=1 // pred_region
      %s38 = ssub.s32 64, 64
      %39 = vsyncadd [#allocation6], %s38
      %s41 = sshll.u32 [#allocation7], 4
      %s42 = int_to_ptr.vmem [resolvable:$true] %s41
      %44 = dma.hbm_to_vmem [thread:$0]  %s2, 64, %s42, [#allocation6]
    $region13: #{tpu_custom_call.1} parent=1 // pred_fallthru
      _
    // Predicated region
    $region14: #{tpu_custom_call.1} parent=1 // pred_check
      _
    $region15: #{tpu_custom_call.1} parent=1 // pred_check_branch
      %46 = sbr.rel (0) target = $region17
    $region16: #{tpu_custom_call.1} parent=1 // pred_region
      %47 = dma.done [#allocation3], 256
    $region17: #{tpu_custom_call.1} parent=1 // pred_fallthru
      _
    // Predicated region
    $region18: #{tpu_custom_call.1} parent=1 // pred_check
      _
    $region19: #{tpu_custom_call.1} parent=1 // pred_check_branch
      %49 = sbr.rel (0) target = $region21
    $region20: #{tpu_custom_call.1} parent=1 // pred_region
      %50 = dma.done [#allocation6], 2560
    $region21: #{tpu_custom_call.1} parent=1 // pred_fallthru
      _
    // Predicated region
    $region22: #{tpu_custom_call.1} parent=1 // pred_check
      _
    $region23: #{tpu_custom_call.1} parent=1 // pred_check_branch
      %52 = sbr.rel (0) target = $region25
    $region24: #{tpu_custom_call.1} parent=1 // pred_region
      %53 = dma.done [#allocation6], 64
    $region25: #{tpu_custom_call.1} parent=1 // pred_fallthru
      _
    %v54 = vld [vmem:[#allocation5] sm:$0xff]
    %v55 = vld [vmem:[#allocation5 + $0x8] sm:$0xff]
    %v56 = vld [vmem:[#allocation5 + $0x10] sm:$0xff]
    %v57 = vld [vmem:[#allocation5 + $0x18] sm:$0xff]
    %v58 = vld [vmem:[#allocation5 + $0x20] sm:$0xff]
    %v59 = vld [vmem:[#allocation5 + $0x28] sm:$0xff]
    %v60 = vld [vmem:[#allocation5 + $0x30] sm:$0xff]
    %v61 = vld [vmem:[#allocation5 + $0x38] sm:$0xff]
    %v62 = vld [vmem:[#allocation5 + $0x40] sm:$0xff]
    %v63 = vld [vmem:[#allocation5 + $0x48] sm:$0xff]
    %v64 = vld [vmem:[#allocation5 + $0x50] sm:$0xff]
    %v65 = vld [vmem:[#allocation5 + $0x58] sm:$0xff]
    %v66 = vld [vmem:[#allocation5 + $0x60] sm:$0xff]
    %v67 = vld [vmem:[#allocation5 + $0x68] sm:$0xff]
    %v68 = vld [vmem:[#allocation5 + $0x70] sm:$0xff]
    %v69 = vld [vmem:[#allocation5 + $0x78] sm:$0xff]
    %v70 = vld [vmem:[#allocation5 + $0x80] sm:$0xff]
    %v71 = vld [vmem:[#allocation5 + $0x88] sm:$0xff]
    %v72 = vld [vmem:[#allocation5 + $0x90] sm:$0xff]
    %v73 = vld [vmem:[#allocation5 + $0x98] sm:$0xff]
    %v74 = vld [vmem:[#allocation7] sm:$0x1]
    %v75 = vld [vmem:[#allocation7 + $0x1] sm:$0x1]
    %v76 = vlaneseq
    %v77 = vshrl.u32 %v76, 7
    %v78 = vsub.s32 0, %v77
    %v79 = vrot.slane %v75, %v78
    %v80 = vld [vmem:[#allocation7 + $0x2] sm:$0x1]
    %v81 = vld [vmem:[#allocation2] sm:$0xff]
    %v82 = vld [vmem:[#allocation2 + $0x8] sm:$0xff]
    %v83 = vlaneseq
    %v84 = vshrl.u32 %v83, 7
    %v85 = vsub.s32 0, %v84
    %v86 = vrot.slane %v74, %v85
    %vm87 = vcmask 261120
    %v89 = vsel %vm87, %v81, 0
    %v92 = vsel %vm87, %v82, 0
    %94 = vmatprep.subr.mxu0 0.0
    %95 = vmatpush1.msra.mxu0 0.0
    %96 = vmatprep.subr.mxu0 0.0
    %97 = vmatpush1.msra.mxu0 0.0
    %98 = vmatprep.subr.mxu0 0.0
    %99 = vmatpush1.msra.mxu0 0.0
    %100 = vmatprep.subr.mxu0 0.0
    %101 = vmatpush1.msra.mxu0 0.0
    %102 = vmatprep.subr.mxu0 0.0
    %103 = vmatpush1.msra.mxu0 0.0
    %104 = vmatprep.subr.mxu0 0.0
    %105 = vmatpush1.msra.mxu0 0.0
    %106 = vmatprep.subr.mxu0 0.0
    %107 = vmatpush1.msra.mxu0 0.0
    %108 = vmatprep.subr.mxu0 0.0
    %109 = vmatpush1.msra.mxu0 0.0
    %110 = vmatprep.subr.mxu0 0.0
    %111 = vmatpush1.msra.mxu0 0.0
    %112 = vmatprep.subr.mxu0 0.0
    %113 = vmatpush1.msra.mxu0 0.0
    %114 = vmatprep.subr.mxu0 0.0
    %115 = vmatpush1.msra.mxu0 0.0
    %116 = vmatprep.subr.mxu0 0.0
    %117 = vmatpush1.msra.mxu0 0.0
    %118 = vmatprep.subr.mxu0 0.0
    %119 = vmatpush1.msra.mxu0 %v57
    %120 = vmatprep.subr.mxu0 0.0
    %121 = vmatpush1.msra.mxu0 %v56
    %122 = vmatprep.subr.mxu0 0.0
    %123 = vmatpush1.msra.mxu0 %v55
    %124 = vmatprep.subr.mxu0 0.0
    %125 = vmatpush1.msra.mxu0 %v54
    %126 = vmatprep.subr.mxu0 0.0
    %127 = vmatpush2.msra.mxu0 0.0
    %128 = vmatprep.subr.mxu0 0.0
    %129 = vmatpush2.msra.mxu0 0.0
    %130 = vmatprep.subr.mxu0 0.0
    %131 = vmatpush2.msra.mxu0 0.0
    %132 = vmatprep.subr.mxu0 0.0
    %133 = vmatpush2.msra.mxu0 0.0
    %134 = vmatprep.subr.mxu0 0.0
    %135 = vmatpush2.msra.mxu0 0.0
    %136 = vmatprep.subr.mxu0 0.0
    %137 = vmatpush2.msra.mxu0 0.0
    %138 = vmatprep.subr.mxu0 0.0
    %139 = vmatpush2.msra.mxu0 0.0
    %140 = vmatprep.subr.mxu0 0.0
    %141 = vmatpush2.msra.mxu0 0.0
    %142 = vmatprep.subr.mxu0 0.0
    %143 = vmatpush2.msra.mxu0 0.0
    %144 = vmatprep.subr.mxu0 0.0
    %145 = vmatpush2.msra.mxu0 0.0
    %146 = vmatprep.subr.mxu0 0.0
    %147 = vmatpush2.msra.mxu0 0.0
    %148 = vmatprep.subr.mxu0 0.0
    %149 = vmatpush2.msra.mxu0 0.0
    %150 = vmatprep.subr.mxu0 0.0
    %151 = vmatpush2.msra.mxu0 0.0
    %152 = vmatprep.subr.mxu0 0.0
    %153 = vmatpush2.msra.mxu0 0.0
    %154 = vmatprep.subr.mxu0 0.0
    %155 = vmatpush2.msra.mxu0 0.0
    %156 = vmatprep.subr.mxu0 0.0
    %157 = vmatpush2.msra.mxu0 0.0
    %158 = vmatprep.mubr.f32.mxu0 0.0
    %159 = vmatmul.mubr.f32.gmra.mxu0 %v89
    %v160 = vpop.f32.mrf.mxu0
    %v161 = vadd.f32 %v86, %v160
    %v162 = vpop.f32.mrf.mxu0
    %163 = vmatprep.mubr.f32.mxu0 0.0
    %164 = vmatmul.mubr.f32.gmra.mxu0 %v92
    %v165 = vpop.f32.mrf.mxu0
    %v166 = vadd.f32 %v86, %v165
    %v167 = vpop.f32.mrf.mxu0
    %168 = vdwg.mxu0
    %v169 = vmul.f32 %v161, 0.5
    %v170 = vtanh.pop %v169
    %v171 = vadd.f32 %v170, 1.0
    %v172 = vmul.f32 %v171, 0.5
    %v173 = vmul.f32 %v172, %v79
    %175 = vrot.lane.b32.xlu0 %v173, 64
    %v176 = vpop.permute.xlu0 %175
    %v178 = vadd.f32 %v161, %v176
    %v179 = vtanh.pop %v178
    %v180 = vsub.f32 1.0, %v172
    %182 = vrot.lane.b32.xlu0 %v179, 96
    %v183 = vpop.permute.xlu0 %182
    %v185 = vmul.f32 %v180, %v183
    %187 = vrot.lane.b32.xlu0 %v185, 96
    %v188 = vpop.permute.xlu0 %187
    %v189 = vsel %vm87, %v188, 0
    %191 = vmatprep.subr.mxu0 0.0
    %192 = vmatpush1.msra.mxu0 0.0
    %193 = vmatprep.subr.mxu0 0.0
    %194 = vmatpush1.msra.mxu0 0.0
    %195 = vmatprep.subr.mxu0 0.0
    %196 = vmatpush1.msra.mxu0 0.0
    %197 = vmatprep.subr.mxu0 0.0
    %198 = vmatpush1.msra.mxu0 0.0
    %199 = vmatprep.subr.mxu0 0.0
    %200 = vmatpush1.msra.mxu0 0.0
    %201 = vmatprep.subr.mxu0 0.0
    %202 = vmatpush1.msra.mxu0 0.0
    %203 = vmatprep.subr.mxu0 0.0
    %204 = vmatpush1.msra.mxu0 0.0
    %205 = vmatprep.subr.mxu0 0.0
    %206 = vmatpush1.msra.mxu0 0.0
    %207 = vmatprep.subr.mxu0 0.0
    %208 = vmatpush1.msra.mxu0 0.0
    %209 = vmatprep.subr.mxu0 0.0
    %210 = vmatpush1.msra.mxu0 0.0
    %211 = vmatprep.subr.mxu0 0.0
    %212 = vmatpush1.msra.mxu0 0.0
    %213 = vmatprep.subr.mxu0 0.0
    %214 = vmatpush1.msra.mxu0 0.0
    %215 = vmatprep.subr.mxu0 0.0
    %216 = vmatpush1.msra.mxu0 %v61
    %217 = vmatprep.subr.mxu0 0.0
    %218 = vmatpush1.msra.mxu0 %v60
    %219 = vmatprep.subr.mxu0 0.0
    %220 = vmatpush1.msra.mxu0 %v59
    %221 = vmatprep.subr.mxu0 0.0
    %222 = vmatpush1.msra.mxu0 %v58
    %223 = vmatprep.subr.mxu0 0.0
    %224 = vmatpush2.msra.mxu0 0.0
    %225 = vmatprep.subr.mxu0 0.0
    %226 = vmatpush2.msra.mxu0 0.0
    %227 = vmatprep.subr.mxu0 0.0
    %228 = vmatpush2.msra.mxu0 0.0
    %229 = vmatprep.subr.mxu0 0.0
    %230 = vmatpush2.msra.mxu0 0.0
    %231 = vmatprep.subr.mxu0 0.0
    %232 = vmatpush2.msra.mxu0 0.0
    %233 = vmatprep.subr.mxu0 0.0
    %234 = vmatpush2.msra.mxu0 0.0
    %235 = vmatprep.subr.mxu0 0.0
    %236 = vmatpush2.msra.mxu0 0.0
    %237 = vmatprep.subr.mxu0 0.0
    %238 = vmatpush2.msra.mxu0 0.0
    %239 = vmatprep.subr.mxu0 0.0
    %240 = vmatpush2.msra.mxu0 0.0
    %241 = vmatprep.subr.mxu0 0.0
    %242 = vmatpush2.msra.mxu0 0.0
    %243 = vmatprep.subr.mxu0 0.0
    %244 = vmatpush2.msra.mxu0 0.0
    %245 = vmatprep.subr.mxu0 0.0
    %246 = vmatpush2.msra.mxu0 0.0
    %247 = vmatprep.subr.mxu0 0.0
    %248 = vmatpush2.msra.mxu0 0.0
    %249 = vmatprep.subr.mxu0 0.0
    %250 = vmatpush2.msra.mxu0 0.0
    %251 = vmatprep.subr.mxu0 0.0
    %252 = vmatpush2.msra.mxu0 0.0
    %253 = vmatprep.subr.mxu0 0.0
    %254 = vmatpush2.msra.mxu0 0.0
    %255 = vmatprep.mubr.f32.mxu0 0.0
    %256 = vmatmul.mubr.f32.gmra.mxu0 %v189
    %v257 = vpop.f32.mrf.mxu0
    %v258 = vadd.f32 0.0, %v257
    %v259 = vpop.f32.mrf.mxu0
    %260 = vdwg.mxu0
    %261 = vmatprep.subr.mxu0 0.0
    %262 = vmatpush1.msra.mxu0 0.0
    %263 = vmatprep.subr.mxu0 0.0
    %264 = vmatpush1.msra.mxu0 0.0
    %265 = vmatprep.subr.mxu0 0.0
    %266 = vmatpush1.msra.mxu0 0.0
    %267 = vmatprep.subr.mxu0 0.0
    %268 = vmatpush1.msra.mxu0 0.0
    %269 = vmatprep.subr.mxu0 0.0
    %270 = vmatpush1.msra.mxu0 0.0
    %271 = vmatprep.subr.mxu0 0.0
    %272 = vmatpush1.msra.mxu0 0.0
    %273 = vmatprep.subr.mxu0 0.0
    %274 = vmatpush1.msra.mxu0 0.0
    %275 = vmatprep.subr.mxu0 0.0
    %276 = vmatpush1.msra.mxu0 0.0
    %277 = vmatprep.subr.mxu0 0.0
    %278 = vmatpush1.msra.mxu0 0.0
    %279 = vmatprep.subr.mxu0 0.0
    %280 = vmatpush1.msra.mxu0 0.0
    %281 = vmatprep.subr.mxu0 0.0
    %282 = vmatpush1.msra.mxu0 0.0
    %283 = vmatprep.subr.mxu0 0.0
    %284 = vmatpush1.msra.mxu0 0.0
    %285 = vmatprep.subr.mxu0 0.0
    %286 = vmatpush1.msra.mxu0 %v65
    %287 = vmatprep.subr.mxu0 0.0
    %288 = vmatpush1.msra.mxu0 %v64
    %289 = vmatprep.subr.mxu0 0.0
    %290 = vmatpush1.msra.mxu0 %v63
    %291 = vmatprep.subr.mxu0 0.0
    %292 = vmatpush1.msra.mxu0 %v62
    %293 = vmatprep.subr.mxu0 0.0
    %294 = vmatpush2.msra.mxu0 0.0
    %295 = vmatprep.subr.mxu0 0.0
    %296 = vmatpush2.msra.mxu0 0.0
    %297 = vmatprep.subr.mxu0 0.0
    %298 = vmatpush2.msra.mxu0 0.0
    %299 = vmatprep.subr.mxu0 0.0
    %300 = vmatpush2.msra.mxu0 0.0
    %301 = vmatprep.subr.mxu0 0.0
    %302 = vmatpush2.msra.mxu0 0.0
    %303 = vmatprep.subr.mxu0 0.0
    %304 = vmatpush2.msra.mxu0 0.0
    %305 = vmatprep.subr.mxu0 0.0
    %306 = vmatpush2.msra.mxu0 0.0
    %307 = vmatprep.subr.mxu0 0.0
    %308 = vmatpush2.msra.mxu0 0.0
    %309 = vmatprep.subr.mxu0 0.0
    %310 = vmatpush2.msra.mxu0 0.0
    %311 = vmatprep.subr.mxu0 0.0
    %312 = vmatpush2.msra.mxu0 0.0
    %313 = vmatprep.subr.mxu0 0.0
    %314 = vmatpush2.msra.mxu0 0.0
    %315 = vmatprep.subr.mxu0 0.0
    %316 = vmatpush2.msra.mxu0 0.0
    %317 = vmatprep.subr.mxu0 0.0
    %318 = vmatpush2.msra.mxu0 0.0
    %319 = vmatprep.subr.mxu0 0.0
    %320 = vmatpush2.msra.mxu0 0.0
    %321 = vmatprep.subr.mxu0 0.0
    %322 = vmatpush2.msra.mxu0 0.0
    %323 = vmatprep.subr.mxu0 0.0
    %324 = vmatpush2.msra.mxu0 0.0
    %325 = vmatprep.mubr.f32.mxu0 0.0
    %326 = vmatmul.mubr.f32.gmra.mxu0 %v189
    %v327 = vpop.f32.mrf.mxu0
    %v328 = vadd.f32 0.0, %v327
    %v329 = vpop.f32.mrf.mxu0
    %330 = vdwg.mxu0
    %v332 = vrot.slane %v258, 6
    %v334 = vadd.f32 %v161, %v332
    %v335 = vmul.f32 %v334, 0.5
    %v336 = vtanh.pop %v335
    %v337 = vadd.f32 %v336, 1.0
    %v338 = vmul.f32 %v337, 0.5
    %v340 = vrot.slane %v328, 6
    %341 = vrot.lane.b32.xlu0 %v340, 32
    %v342 = vpop.permute.xlu0 %341
    %v344 = vadd.f32 %v161, %v342
    %v345 = vmul.f32 %v344, 0.5
    %v346 = vtanh.pop %v345
    %v347 = vadd.f32 %v346, 1.0
    %v348 = vmul.f32 %v347, 0.5
    %349 = vmatprep.subr.mxu0 0.0
    %350 = vmatpush1.msra.mxu0 0.0
    %351 = vmatprep.subr.mxu0 0.0
    %352 = vmatpush1.msra.mxu0 0.0
    %353 = vmatprep.subr.mxu0 0.0
    %354 = vmatpush1.msra.mxu0 0.0
    %355 = vmatprep.subr.mxu0 0.0
    %356 = vmatpush1.msra.mxu0 0.0
    %357 = vmatprep.subr.mxu0 0.0
    %358 = vmatpush1.msra.mxu0 0.0
    %359 = vmatprep.subr.mxu0 0.0
    %360 = vmatpush1.msra.mxu0 0.0
    %361 = vmatprep.subr.mxu0 0.0
    %362 = vmatpush1.msra.mxu0 0.0
    %363 = vmatprep.subr.mxu0 0.0
    %364 = vmatpush1.msra.mxu0 0.0
    %365 = vmatprep.subr.mxu0 0.0
    %366 = vmatpush1.msra.mxu0 0.0
    %367 = vmatprep.subr.mxu0 0.0
    %368 = vmatpush1.msra.mxu0 0.0
    %369 = vmatprep.subr.mxu0 0.0
    %370 = vmatpush1.msra.mxu0 0.0
    %371 = vmatprep.subr.mxu0 0.0
    %372 = vmatpush1.msra.mxu0 0.0
    %373 = vmatprep.subr.mxu0 0.0
    %374 = vmatpush1.msra.mxu0 %v69
    %375 = vmatprep.subr.mxu0 0.0
    %376 = vmatpush1.msra.mxu0 %v68
    %377 = vmatprep.subr.mxu0 0.0
    %378 = vmatpush1.msra.mxu0 %v67
    %379 = vmatprep.subr.mxu0 0.0
    %380 = vmatpush1.msra.mxu0 %v66
    %381 = vmatprep.subr.mxu0 0.0
    %382 = vmatpush2.msra.mxu0 0.0
    %383 = vmatprep.subr.mxu0 0.0
    %384 = vmatpush2.msra.mxu0 0.0
    %385 = vmatprep.subr.mxu0 0.0
    %386 = vmatpush2.msra.mxu0 0.0
    %387 = vmatprep.subr.mxu0 0.0
    %388 = vmatpush2.msra.mxu0 0.0
    %389 = vmatprep.subr.mxu0 0.0
    %390 = vmatpush2.msra.mxu0 0.0
    %391 = vmatprep.subr.mxu0 0.0
    %392 = vmatpush2.msra.mxu0 0.0
    %393 = vmatprep.subr.mxu0 0.0
    %394 = vmatpush2.msra.mxu0 0.0
    %395 = vmatprep.subr.mxu0 0.0
    %396 = vmatpush2.msra.mxu0 0.0
    %397 = vmatprep.subr.mxu0 0.0
    %398 = vmatpush2.msra.mxu0 0.0
    %399 = vmatprep.subr.mxu0 0.0
    %400 = vmatpush2.msra.mxu0 0.0
    %401 = vmatprep.subr.mxu0 0.0
    %402 = vmatpush2.msra.mxu0 0.0
    %403 = vmatprep.subr.mxu0 0.0
    %404 = vmatpush2.msra.mxu0 0.0
    %405 = vmatprep.subr.mxu0 0.0
    %406 = vmatpush2.msra.mxu0 0.0
    %407 = vmatprep.subr.mxu0 0.0
    %408 = vmatpush2.msra.mxu0 0.0
    %409 = vmatprep.subr.mxu0 0.0
    %410 = vmatpush2.msra.mxu0 0.0
    %411 = vmatprep.subr.mxu0 0.0
    %412 = vmatpush2.msra.mxu0 0.0
    %413 = vmatprep.mubr.f32.mxu0 0.0
    %414 = vmatmul.mubr.f32.gmra.mxu0 %v189
    %v415 = vpop.f32.mrf.mxu0
    %v416 = vadd.f32 %v79, %v415
    %v417 = vpop.f32.mrf.mxu0
    %418 = vdwg.mxu0
    %v420 = vrot.slane %v416, 6
    %v422 = vmul.f32 %v338, %v420
    %424 = vrot.lane.b32.xlu0 %v422, 64
    %v425 = vpop.permute.xlu0 %424
    %v427 = vadd.f32 %v161, %v425
    %v428 = vtanh.pop %v427
    %v429 = vsub.f32 1.0, %v348
    %431 = vrot.lane.b32.xlu0 %v428, 96
    %v432 = vpop.permute.xlu0 %431
    %v434 = vmul.f32 %v429, %v432
    %v435 = vrot.slane %v185, 6
    %v437 = vmul.f32 %v348, %v435
    %v438 = vadd.f32 %v434, %v437
    %v440 = vrot.slane %v438, 2
    %441 = vrot.lane.b32.xlu0 %v440, 96
    %v442 = vpop.permute.xlu0 %441
    %v443 = vsel %vm87, %v442, 0
    %445 = vmatprep.subr.mxu0 0.0
    %446 = vmatpush1.msra.mxu0 0.0
    %447 = vmatprep.subr.mxu0 0.0
    %448 = vmatpush1.msra.mxu0 0.0
    %449 = vmatprep.subr.mxu0 0.0
    %450 = vmatpush1.msra.mxu0 0.0
    %451 = vmatprep.subr.mxu0 0.0
    %452 = vmatpush1.msra.mxu0 0.0
    %453 = vmatprep.subr.mxu0 0.0
    %454 = vmatpush1.msra.mxu0 0.0
    %455 = vmatprep.subr.mxu0 0.0
    %456 = vmatpush1.msra.mxu0 0.0
    %457 = vmatprep.subr.mxu0 0.0
    %458 = vmatpush1.msra.mxu0 0.0
    %459 = vmatprep.subr.mxu0 0.0
    %460 = vmatpush1.msra.mxu0 0.0
    %461 = vmatprep.subr.mxu0 0.0
    %462 = vmatpush1.msra.mxu0 0.0
    %463 = vmatprep.subr.mxu0 0.0
    %464 = vmatpush1.msra.mxu0 0.0
    %465 = vmatprep.subr.mxu0 0.0
    %466 = vmatpush1.msra.mxu0 0.0
    %467 = vmatprep.subr.mxu0 0.0
    %468 = vmatpush1.msra.mxu0 0.0
    %469 = vmatprep.subr.mxu0 0.0
    %470 = vmatpush1.msra.mxu0 %v61
    %471 = vmatprep.subr.mxu0 0.0
    %472 = vmatpush1.msra.mxu0 %v60
    %473 = vmatprep.subr.mxu0 0.0
    %474 = vmatpush1.msra.mxu0 %v59
    %475 = vmatprep.subr.mxu0 0.0
    %476 = vmatpush1.msra.mxu0 %v58
    %477 = vmatprep.subr.mxu0 0.0
    %478 = vmatpush2.msra.mxu0 0.0
    %479 = vmatprep.subr.mxu0 0.0
    %480 = vmatpush2.msra.mxu0 0.0
    %481 = vmatprep.subr.mxu0 0.0
    %482 = vmatpush2.msra.mxu0 0.0
    %483 = vmatprep.subr.mxu0 0.0
    %484 = vmatpush2.msra.mxu0 0.0
    %485 = vmatprep.subr.mxu0 0.0
    %486 = vmatpush2.msra.mxu0 0.0
    %487 = vmatprep.subr.mxu0 0.0
    %488 = vmatpush2.msra.mxu0 0.0
    %489 = vmatprep.subr.mxu0 0.0
    %490 = vmatpush2.msra.mxu0 0.0
    %491 = vmatprep.subr.mxu0 0.0
    %492 = vmatpush2.msra.mxu0 0.0
    %493 = vmatprep.subr.mxu0 0.0
    %494 = vmatpush2.msra.mxu0 0.0
    %495 = vmatprep.subr.mxu0 0.0
    %496 = vmatpush2.msra.mxu0 0.0
    %497 = vmatprep.subr.mxu0 0.0
    %498 = vmatpush2.msra.mxu0 0.0
    %499 = vmatprep.subr.mxu0 0.0
    %500 = vmatpush2.msra.mxu0 0.0
    %501 = vmatprep.subr.mxu0 0.0
    %502 = vmatpush2.msra.mxu0 0.0
    %503 = vmatprep.subr.mxu0 0.0
    %504 = vmatpush2.msra.mxu0 0.0
    %505 = vmatprep.subr.mxu0 0.0
    %506 = vmatpush2.msra.mxu0 0.0
    %507 = vmatprep.subr.mxu0 0.0
    %508 = vmatpush2.msra.mxu0 0.0
    %509 = vmatprep.mubr.f32.mxu0 0.0
    %510 = vmatmul.mubr.f32.gmra.mxu0 %v443
    %v511 = vpop.f32.mrf.mxu0
    %v512 = vadd.f32 0.0, %v511
    %v513 = vpop.f32.mrf.mxu0
    %514 = vdwg.mxu0
    %515 = vmatprep.subr.mxu0 0.0
    %516 = vmatpush1.msra.mxu0 0.0
    %517 = vmatprep.subr.mxu0 0.0
    %518 = vmatpush1.msra.mxu0 0.0
    %519 = vmatprep.subr.mxu0 0.0
    %520 = vmatpush1.msra.mxu0 0.0
    %521 = vmatprep.subr.mxu0 0.0
    %522 = vmatpush1.msra.mxu0 0.0
    %523 = vmatprep.subr.mxu0 0.0
    %524 = vmatpush1.msra.mxu0 0.0
    %525 = vmatprep.subr.mxu0 0.0
    %526 = vmatpush1.msra.mxu0 0.0
    %527 = vmatprep.subr.mxu0 0.0
    %528 = vmatpush1.msra.mxu0 0.0
    %529 = vmatprep.subr.mxu0 0.0
    %530 = vmatpush1.msra.mxu0 0.0
    %531 = vmatprep.subr.mxu0 0.0
    %532 = vmatpush1.msra.mxu0 0.0
    %533 = vmatprep.subr.mxu0 0.0
    %534 = vmatpush1.msra.mxu0 0.0
    %535 = vmatprep.subr.mxu0 0.0
    %536 = vmatpush1.msra.mxu0 0.0
    %537 = vmatprep.subr.mxu0 0.0
    %538 = vmatpush1.msra.mxu0 0.0
    %539 = vmatprep.subr.mxu0 0.0
    %540 = vmatpush1.msra.mxu0 %v65
    %541 = vmatprep.subr.mxu0 0.0
    %542 = vmatpush1.msra.mxu0 %v64
    %543 = vmatprep.subr.mxu0 0.0
    %544 = vmatpush1.msra.mxu0 %v63
    %545 = vmatprep.subr.mxu0 0.0
    %546 = vmatpush1.msra.mxu0 %v62
    %547 = vmatprep.subr.mxu0 0.0
    %548 = vmatpush2.msra.mxu0 0.0
    %549 = vmatprep.subr.mxu0 0.0
    %550 = vmatpush2.msra.mxu0 0.0
    %551 = vmatprep.subr.mxu0 0.0
    %552 = vmatpush2.msra.mxu0 0.0
    %553 = vmatprep.subr.mxu0 0.0
    %554 = vmatpush2.msra.mxu0 0.0
    %555 = vmatprep.subr.mxu0 0.0
    %556 = vmatpush2.msra.mxu0 0.0
    %557 = vmatprep.subr.mxu0 0.0
    %558 = vmatpush2.msra.mxu0 0.0
    %559 = vmatprep.subr.mxu0 0.0
    %560 = vmatpush2.msra.mxu0 0.0
    %561 = vmatprep.subr.mxu0 0.0
    %562 = vmatpush2.msra.mxu0 0.0
    %563 = vmatprep.subr.mxu0 0.0
    %564 = vmatpush2.msra.mxu0 0.0
    %565 = vmatprep.subr.mxu0 0.0
    %566 = vmatpush2.msra.mxu0 0.0
    %567 = vmatprep.subr.mxu0 0.0
    %568 = vmatpush2.msra.mxu0 0.0
    %569 = vmatprep.subr.mxu0 0.0
    %570 = vmatpush2.msra.mxu0 0.0
    %571 = vmatprep.subr.mxu0 0.0
    %572 = vmatpush2.msra.mxu0 0.0
    %573 = vmatprep.subr.mxu0 0.0
    %574 = vmatpush2.msra.mxu0 0.0
    %575 = vmatprep.subr.mxu0 0.0
    %576 = vmatpush2.msra.mxu0 0.0
    %577 = vmatprep.subr.mxu0 0.0
    %578 = vmatpush2.msra.mxu0 0.0
    %579 = vmatprep.mubr.f32.mxu0 0.0
    %580 = vmatmul.mubr.f32.gmra.mxu0 %v443
    %v581 = vpop.f32.mrf.mxu0
    %v582 = vadd.f32 0.0, %v581
    %v583 = vpop.f32.mrf.mxu0
    %584 = vdwg.mxu0
    %v586 = vrot.slane %v512, 4
    %v588 = vadd.f32 %v161, %v586
    %v589 = vmul.f32 %v588, 0.5
    %v590 = vtanh.pop %v589
    %v591 = vadd.f32 %v590, 1.0
    %v592 = vmul.f32 %v591, 0.5
    %v594 = vrot.slane %v582, 4
    %595 = vrot.lane.b32.xlu0 %v594, 32
    %v596 = vpop.permute.xlu0 %595
    %v598 = vadd.f32 %v161, %v596
    %v599 = vmul.f32 %v598, 0.5
    %v600 = vtanh.pop %v599
    %v601 = vadd.f32 %v600, 1.0
    %v602 = vmul.f32 %v601, 0.5
    %603 = vmatprep.subr.mxu0 0.0
    %604 = vmatpush1.msra.mxu0 0.0
    %605 = vmatprep.subr.mxu0 0.0
    %606 = vmatpush1.msra.mxu0 0.0
    %607 = vmatprep.subr.mxu0 0.0
    %608 = vmatpush1.msra.mxu0 0.0
    %609 = vmatprep.subr.mxu0 0.0
    %610 = vmatpush1.msra.mxu0 0.0
    %611 = vmatprep.subr.mxu0 0.0
    %612 = vmatpush1.msra.mxu0 0.0
    %613 = vmatprep.subr.mxu0 0.0
    %614 = vmatpush1.msra.mxu0 0.0
    %615 = vmatprep.subr.mxu0 0.0
    %616 = vmatpush1.msra.mxu0 0.0
    %617 = vmatprep.subr.mxu0 0.0
    %618 = vmatpush1.msra.mxu0 0.0
    %619 = vmatprep.subr.mxu0 0.0
    %620 = vmatpush1.msra.mxu0 0.0
    %621 = vmatprep.subr.mxu0 0.0
    %622 = vmatpush1.msra.mxu0 0.0
    %623 = vmatprep.subr.mxu0 0.0
    %624 = vmatpush1.msra.mxu0 0.0
    %625 = vmatprep.subr.mxu0 0.0
    %626 = vmatpush1.msra.mxu0 0.0
    %627 = vmatprep.subr.mxu0 0.0
    %628 = vmatpush1.msra.mxu0 %v69
    %629 = vmatprep.subr.mxu0 0.0
    %630 = vmatpush1.msra.mxu0 %v68
    %631 = vmatprep.subr.mxu0 0.0
    %632 = vmatpush1.msra.mxu0 %v67
    %633 = vmatprep.subr.mxu0 0.0
    %634 = vmatpush1.msra.mxu0 %v66
    %635 = vmatprep.subr.mxu0 0.0
    %636 = vmatpush2.msra.mxu0 0.0
    %637 = vmatprep.subr.mxu0 0.0
    %638 = vmatpush2.msra.mxu0 0.0
    %639 = vmatprep.subr.mxu0 0.0
    %640 = vmatpush2.msra.mxu0 0.0
    %641 = vmatprep.subr.mxu0 0.0
    %642 = vmatpush2.msra.mxu0 0.0
    %643 = vmatprep.subr.mxu0 0.0
    %644 = vmatpush2.msra.mxu0 0.0
    %645 = vmatprep.subr.mxu0 0.0
    %646 = vmatpush2.msra.mxu0 0.0
    %647 = vmatprep.subr.mxu0 0.0
    %648 = vmatpush2.msra.mxu0 0.0
    %649 = vmatprep.subr.mxu0 0.0
    %650 = vmatpush2.msra.mxu0 0.0
    %651 = vmatprep.subr.mxu0 0.0
    %652 = vmatpush2.msra.mxu0 0.0
    %653 = vmatprep.subr.mxu0 0.0
    %654 = vmatpush2.msra.mxu0 0.0
    %655 = vmatprep.subr.mxu0 0.0
    %656 = vmatpush2.msra.mxu0 0.0
    %657 = vmatprep.subr.mxu0 0.0
    %658 = vmatpush2.msra.mxu0 0.0
    %659 = vmatprep.subr.mxu0 0.0
    %660 = vmatpush2.msra.mxu0 0.0
    %661 = vmatprep.subr.mxu0 0.0
    %662 = vmatpush2.msra.mxu0 0.0
    %663 = vmatprep.subr.mxu0 0.0
    %664 = vmatpush2.msra.mxu0 0.0
    %665 = vmatprep.subr.mxu0 0.0
    %666 = vmatpush2.msra.mxu0 0.0
    %667 = vmatprep.mubr.f32.mxu0 0.0
    %668 = vmatmul.mubr.f32.gmra.mxu0 %v443
    %v669 = vpop.f32.mrf.mxu0
    %v670 = vadd.f32 %v79, %v669
    %v671 = vpop.f32.mrf.mxu0
    %672 = vdwg.mxu0
    %v674 = vrot.slane %v670, 4
    %v676 = vmul.f32 %v592, %v674
    %678 = vrot.lane.b32.xlu0 %v676, 64
    %v679 = vpop.permute.xlu0 %678
    %v681 = vadd.f32 %v161, %v679
    %v682 = vtanh.pop %v681
    %v683 = vsub.f32 1.0, %v602
    %685 = vrot.lane.b32.xlu0 %v682, 96
    %v686 = vpop.permute.xlu0 %685
    %v688 = vmul.f32 %v683, %v686
    %v689 = vrot.slane %v438, 6
    %v691 = vmul.f32 %v602, %v689
    %v692 = vadd.f32 %v688, %v691
    %v694 = vrot.slane %v692, 4
    %695 = vrot.lane.b32.xlu0 %v694, 96
    %v696 = vpop.permute.xlu0 %695
    %v697 = vsel %vm87, %v696, 0
    %699 = vmatprep.subr.mxu0 0.0
    %700 = vmatpush1.msra.mxu0 0.0
    %701 = vmatprep.subr.mxu0 0.0
    %702 = vmatpush1.msra.mxu0 0.0
    %703 = vmatprep.subr.mxu0 0.0
    %704 = vmatpush1.msra.mxu0 0.0
    %705 = vmatprep.subr.mxu0 0.0
    %706 = vmatpush1.msra.mxu0 0.0
    %707 = vmatprep.subr.mxu0 0.0
    %708 = vmatpush1.msra.mxu0 0.0
    %709 = vmatprep.subr.mxu0 0.0
    %710 = vmatpush1.msra.mxu0 0.0
    %711 = vmatprep.subr.mxu0 0.0
    %712 = vmatpush1.msra.mxu0 0.0
    %713 = vmatprep.subr.mxu0 0.0
    %714 = vmatpush1.msra.mxu0 0.0
    %715 = vmatprep.subr.mxu0 0.0
    %716 = vmatpush1.msra.mxu0 0.0
    %717 = vmatprep.subr.mxu0 0.0
    %718 = vmatpush1.msra.mxu0 0.0
    %719 = vmatprep.subr.mxu0 0.0
    %720 = vmatpush1.msra.mxu0 0.0
    %721 = vmatprep.subr.mxu0 0.0
    %722 = vmatpush1.msra.mxu0 0.0
    %723 = vmatprep.subr.mxu0 0.0
    %724 = vmatpush1.msra.mxu0 %v61
    %725 = vmatprep.subr.mxu0 0.0
    %726 = vmatpush1.msra.mxu0 %v60
    %727 = vmatprep.subr.mxu0 0.0
    %728 = vmatpush1.msra.mxu0 %v59
    %729 = vmatprep.subr.mxu0 0.0
    %730 = vmatpush1.msra.mxu0 %v58
    %731 = vmatprep.subr.mxu0 0.0
    %732 = vmatpush2.msra.mxu0 0.0
    %733 = vmatprep.subr.mxu0 0.0
    %734 = vmatpush2.msra.mxu0 0.0
    %735 = vmatprep.subr.mxu0 0.0
    %736 = vmatpush2.msra.mxu0 0.0
    %737 = vmatprep.subr.mxu0 0.0
    %738 = vmatpush2.msra.mxu0 0.0
    %739 = vmatprep.subr.mxu0 0.0
    %740 = vmatpush2.msra.mxu0 0.0
    %741 = vmatprep.subr.mxu0 0.0
    %742 = vmatpush2.msra.mxu0 0.0
    %743 = vmatprep.subr.mxu0 0.0
    %744 = vmatpush2.msra.mxu0 0.0
    %745 = vmatprep.subr.mxu0 0.0
    %746 = vmatpush2.msra.mxu0 0.0
    %747 = vmatprep.subr.mxu0 0.0
    %748 = vmatpush2.msra.mxu0 0.0
    %749 = vmatprep.subr.mxu0 0.0
    %750 = vmatpush2.msra.mxu0 0.0
    %751 = vmatprep.subr.mxu0 0.0
    %752 = vmatpush2.msra.mxu0 0.0
    %753 = vmatprep.subr.mxu0 0.0
    %754 = vmatpush2.msra.mxu0 0.0
    %755 = vmatprep.subr.mxu0 0.0
    %756 = vmatpush2.msra.mxu0 0.0
    %757 = vmatprep.subr.mxu0 0.0
    %758 = vmatpush2.msra.mxu0 0.0
    %759 = vmatprep.subr.mxu0 0.0
    %760 = vmatpush2.msra.mxu0 0.0
    %761 = vmatprep.subr.mxu0 0.0
    %762 = vmatpush2.msra.mxu0 0.0
    %763 = vmatprep.mubr.f32.mxu0 0.0
    %764 = vmatmul.mubr.f32.gmra.mxu0 %v697
    %v765 = vpop.f32.mrf.mxu0
    %v766 = vadd.f32 0.0, %v765
    %v767 = vpop.f32.mrf.mxu0
    %768 = vdwg.mxu0
    %769 = vmatprep.subr.mxu0 0.0
    %770 = vmatpush1.msra.mxu0 0.0
    %771 = vmatprep.subr.mxu0 0.0
    %772 = vmatpush1.msra.mxu0 0.0
    %773 = vmatprep.subr.mxu0 0.0
    %774 = vmatpush1.msra.mxu0 0.0
    %775 = vmatprep.subr.mxu0 0.0
    %776 = vmatpush1.msra.mxu0 0.0
    %777 = vmatprep.subr.mxu0 0.0
    %778 = vmatpush1.msra.mxu0 0.0
    %779 = vmatprep.subr.mxu0 0.0
    %780 = vmatpush1.msra.mxu0 0.0
    %781 = vmatprep.subr.mxu0 0.0
    %782 = vmatpush1.msra.mxu0 0.0
    %783 = vmatprep.subr.mxu0 0.0
    %784 = vmatpush1.msra.mxu0 0.0
    %785 = vmatprep.subr.mxu0 0.0
    %786 = vmatpush1.msra.mxu0 0.0
    %787 = vmatprep.subr.mxu0 0.0
    %788 = vmatpush1.msra.mxu0 0.0
    %789 = vmatprep.subr.mxu0 0.0
    %790 = vmatpush1.msra.mxu0 0.0
    %791 = vmatprep.subr.mxu0 0.0
    %792 = vmatpush1.msra.mxu0 0.0
    %793 = vmatprep.subr.mxu0 0.0
    %794 = vmatpush1.msra.mxu0 %v65
    %795 = vmatprep.subr.mxu0 0.0
    %796 = vmatpush1.msra.mxu0 %v64
    %797 = vmatprep.subr.mxu0 0.0
    %798 = vmatpush1.msra.mxu0 %v63
    %799 = vmatprep.subr.mxu0 0.0
    %800 = vmatpush1.msra.mxu0 %v62
    %801 = vmatprep.subr.mxu0 0.0
    %802 = vmatpush2.msra.mxu0 0.0
    %803 = vmatprep.subr.mxu0 0.0
    %804 = vmatpush2.msra.mxu0 0.0
    %805 = vmatprep.subr.mxu0 0.0
    %806 = vmatpush2.msra.mxu0 0.0
    %807 = vmatprep.subr.mxu0 0.0
    %808 = vmatpush2.msra.mxu0 0.0
    %809 = vmatprep.subr.mxu0 0.0
    %810 = vmatpush2.msra.mxu0 0.0
    %811 = vmatprep.subr.mxu0 0.0
    %812 = vmatpush2.msra.mxu0 0.0
    %813 = vmatprep.subr.mxu0 0.0
    %814 = vmatpush2.msra.mxu0 0.0
    %815 = vmatprep.subr.mxu0 0.0
    %816 = vmatpush2.msra.mxu0 0.0
    %817 = vmatprep.subr.mxu0 0.0
    %818 = vmatpush2.msra.mxu0 0.0
    %819 = vmatprep.subr.mxu0 0.0
    %820 = vmatpush2.msra.mxu0 0.0
    %821 = vmatprep.subr.mxu0 0.0
    %822 = vmatpush2.msra.mxu0 0.0
    %823 = vmatprep.subr.mxu0 0.0
    %824 = vmatpush2.msra.mxu0 0.0
    %825 = vmatprep.subr.mxu0 0.0
    %826 = vmatpush2.msra.mxu0 0.0
    %827 = vmatprep.subr.mxu0 0.0
    %828 = vmatpush2.msra.mxu0 0.0
    %829 = vmatprep.subr.mxu0 0.0
    %830 = vmatpush2.msra.mxu0 0.0
    %831 = vmatprep.subr.mxu0 0.0
    %832 = vmatpush2.msra.mxu0 0.0
    %833 = vmatprep.mubr.f32.mxu0 0.0
    %834 = vmatmul.mubr.f32.gmra.mxu0 %v697
    %v835 = vpop.f32.mrf.mxu0
    %v836 = vadd.f32 0.0, %v835
    %v837 = vpop.f32.mrf.mxu0
    %838 = vdwg.mxu0
    %v840 = vrot.slane %v766, 2
    %v842 = vadd.f32 %v161, %v840
    %v843 = vmul.f32 %v842, 0.5
    %v844 = vtanh.pop %v843
    %v845 = vadd.f32 %v844, 1.0
    %v846 = vmul.f32 %v845, 0.5
    %v848 = vrot.slane %v836, 2
    %849 = vrot.lane.b32.xlu0 %v848, 32
    %v850 = vpop.permute.xlu0 %849
    %v852 = vadd.f32 %v161, %v850
    %v853 = vmul.f32 %v852, 0.5
    %v854 = vtanh.pop %v853
    %v855 = vadd.f32 %v854, 1.0
    %v856 = vmul.f32 %v855, 0.5
    %857 = vmatprep.subr.mxu0 0.0
    %858 = vmatpush1.msra.mxu0 0.0
    %859 = vmatprep.subr.mxu0 0.0
    %860 = vmatpush1.msra.mxu0 0.0
    %861 = vmatprep.subr.mxu0 0.0
    %862 = vmatpush1.msra.mxu0 0.0
    %863 = vmatprep.subr.mxu0 0.0
    %864 = vmatpush1.msra.mxu0 0.0
    %865 = vmatprep.subr.mxu0 0.0
    %866 = vmatpush1.msra.mxu0 0.0
    %867 = vmatprep.subr.mxu0 0.0
    %868 = vmatpush1.msra.mxu0 0.0
    %869 = vmatprep.subr.mxu0 0.0
    %870 = vmatpush1.msra.mxu0 0.0
    %871 = vmatprep.subr.mxu0 0.0
    %872 = vmatpush1.msra.mxu0 0.0
    %873 = vmatprep.subr.mxu0 0.0
    %874 = vmatpush1.msra.mxu0 0.0
    %875 = vmatprep.subr.mxu0 0.0
    %876 = vmatpush1.msra.mxu0 0.0
    %877 = vmatprep.subr.mxu0 0.0
    %878 = vmatpush1.msra.mxu0 0.0
    %879 = vmatprep.subr.mxu0 0.0
    %880 = vmatpush1.msra.mxu0 0.0
    %881 = vmatprep.subr.mxu0 0.0
    %882 = vmatpush1.msra.mxu0 %v69
    %883 = vmatprep.subr.mxu0 0.0
    %884 = vmatpush1.msra.mxu0 %v68
    %885 = vmatprep.subr.mxu0 0.0
    %886 = vmatpush1.msra.mxu0 %v67
    %887 = vmatprep.subr.mxu0 0.0
    %888 = vmatpush1.msra.mxu0 %v66
    %889 = vmatprep.subr.mxu0 0.0
    %890 = vmatpush2.msra.mxu0 0.0
    %891 = vmatprep.subr.mxu0 0.0
    %892 = vmatpush2.msra.mxu0 0.0
    %893 = vmatprep.subr.mxu0 0.0
    %894 = vmatpush2.msra.mxu0 0.0
    %895 = vmatprep.subr.mxu0 0.0
    %896 = vmatpush2.msra.mxu0 0.0
    %897 = vmatprep.subr.mxu0 0.0
    %898 = vmatpush2.msra.mxu0 0.0
    %899 = vmatprep.subr.mxu0 0.0
    %900 = vmatpush2.msra.mxu0 0.0
    %901 = vmatprep.subr.mxu0 0.0
    %902 = vmatpush2.msra.mxu0 0.0
    %903 = vmatprep.subr.mxu0 0.0
    %904 = vmatpush2.msra.mxu0 0.0
    %905 = vmatprep.subr.mxu0 0.0
    %906 = vmatpush2.msra.mxu0 0.0
    %907 = vmatprep.subr.mxu0 0.0
    %908 = vmatpush2.msra.mxu0 0.0
    %909 = vmatprep.subr.mxu0 0.0
    %910 = vmatpush2.msra.mxu0 0.0
    %911 = vmatprep.subr.mxu0 0.0
    %912 = vmatpush2.msra.mxu0 0.0
    %913 = vmatprep.subr.mxu0 0.0
    %914 = vmatpush2.msra.mxu0 0.0
    %915 = vmatprep.subr.mxu0 0.0
    %916 = vmatpush2.msra.mxu0 0.0
    %917 = vmatprep.subr.mxu0 0.0
    %918 = vmatpush2.msra.mxu0 0.0
    %919 = vmatprep.subr.mxu0 0.0
    %920 = vmatpush2.msra.mxu0 0.0
    %921 = vmatprep.mubr.f32.mxu0 0.0
    %922 = vmatmul.mubr.f32.gmra.mxu0 %v697
    %v923 = vpop.f32.mrf.mxu0
    %v924 = vadd.f32 %v79, %v923
    %v925 = vpop.f32.mrf.mxu0
    %926 = vdwg.mxu0
    %v928 = vrot.slane %v924, 2
    %v930 = vmul.f32 %v846, %v928
    %932 = vrot.lane.b32.xlu0 %v930, 64
    %v933 = vpop.permute.xlu0 %932
    %v935 = vadd.f32 %v161, %v933
    %v936 = vtanh.pop %v935
    %v937 = vsub.f32 1.0, %v856
    %939 = vrot.lane.b32.xlu0 %v936, 96
    %v940 = vpop.permute.xlu0 %939
    %v942 = vmul.f32 %v937, %v940
    %v943 = vrot.slane %v692, 6
    %v945 = vmul.f32 %v856, %v943
    %v946 = vadd.f32 %v942, %v945
    %v948 = vrot.slane %v946, 6
    %949 = vrot.lane.b32.xlu0 %v948, 96
    %v950 = vpop.permute.xlu0 %949
    %v951 = vsel %vm87, %v950, 0
    %953 = vmatprep.subr.mxu0 0.0
    %954 = vmatpush1.msra.mxu0 0.0
    %955 = vmatprep.subr.mxu0 0.0
    %956 = vmatpush1.msra.mxu0 0.0
    %957 = vmatprep.subr.mxu0 0.0
    %958 = vmatpush1.msra.mxu0 0.0
    %959 = vmatprep.subr.mxu0 0.0
    %960 = vmatpush1.msra.mxu0 0.0
    %961 = vmatprep.subr.mxu0 0.0
    %962 = vmatpush1.msra.mxu0 0.0
    %963 = vmatprep.subr.mxu0 0.0
    %964 = vmatpush1.msra.mxu0 0.0
    %965 = vmatprep.subr.mxu0 0.0
    %966 = vmatpush1.msra.mxu0 0.0
    %967 = vmatprep.subr.mxu0 0.0
    %968 = vmatpush1.msra.mxu0 0.0
    %969 = vmatprep.subr.mxu0 0.0
    %970 = vmatpush1.msra.mxu0 0.0
    %971 = vmatprep.subr.mxu0 0.0
    %972 = vmatpush1.msra.mxu0 0.0
    %973 = vmatprep.subr.mxu0 0.0
    %974 = vmatpush1.msra.mxu0 0.0
    %975 = vmatprep.subr.mxu0 0.0
    %976 = vmatpush1.msra.mxu0 0.0
    %977 = vmatprep.subr.mxu0 0.0
    %978 = vmatpush1.msra.mxu0 %v61
    %979 = vmatprep.subr.mxu0 0.0
    %980 = vmatpush1.msra.mxu0 %v60
    %981 = vmatprep.subr.mxu0 0.0
    %982 = vmatpush1.msra.mxu0 %v59
    %983 = vmatprep.subr.mxu0 0.0
    %984 = vmatpush1.msra.mxu0 %v58
    %985 = vmatprep.subr.mxu0 0.0
    %986 = vmatpush2.msra.mxu0 0.0
    %987 = vmatprep.subr.mxu0 0.0
    %988 = vmatpush2.msra.mxu0 0.0
    %989 = vmatprep.subr.mxu0 0.0
    %990 = vmatpush2.msra.mxu0 0.0
    %991 = vmatprep.subr.mxu0 0.0
    %992 = vmatpush2.msra.mxu0 0.0
    %993 = vmatprep.subr.mxu0 0.0
    %994 = vmatpush2.msra.mxu0 0.0
    %995 = vmatprep.subr.mxu0 0.0
    %996 = vmatpush2.msra.mxu0 0.0
    %997 = vmatprep.subr.mxu0 0.0
    %998 = vmatpush2.msra.mxu0 0.0
    %999 = vmatprep.subr.mxu0 0.0
    %1000 = vmatpush2.msra.mxu0 0.0
    %1001 = vmatprep.subr.mxu0 0.0
    %1002 = vmatpush2.msra.mxu0 0.0
    %1003 = vmatprep.subr.mxu0 0.0
    %1004 = vmatpush2.msra.mxu0 0.0
    %1005 = vmatprep.subr.mxu0 0.0
    %1006 = vmatpush2.msra.mxu0 0.0
    %1007 = vmatprep.subr.mxu0 0.0
    %1008 = vmatpush2.msra.mxu0 0.0
    %1009 = vmatprep.subr.mxu0 0.0
    %1010 = vmatpush2.msra.mxu0 0.0
    %1011 = vmatprep.subr.mxu0 0.0
    %1012 = vmatpush2.msra.mxu0 0.0
    %1013 = vmatprep.subr.mxu0 0.0
    %1014 = vmatpush2.msra.mxu0 0.0
    %1015 = vmatprep.subr.mxu0 0.0
    %1016 = vmatpush2.msra.mxu0 0.0
    %1017 = vmatprep.mubr.f32.mxu0 0.0
    %1018 = vmatmul.mubr.f32.gmra.mxu0 %v951
    %v1019 = vpop.f32.mrf.mxu0
    %v1020 = vadd.f32 0.0, %v1019
    %v1021 = vpop.f32.mrf.mxu0
    %1022 = vdwg.mxu0
    %1023 = vmatprep.subr.mxu0 0.0
    %1024 = vmatpush1.msra.mxu0 0.0
    %1025 = vmatprep.subr.mxu0 0.0
    %1026 = vmatpush1.msra.mxu0 0.0
    %1027 = vmatprep.subr.mxu0 0.0
    %1028 = vmatpush1.msra.mxu0 0.0
    %1029 = vmatprep.subr.mxu0 0.0
    %1030 = vmatpush1.msra.mxu0 0.0
    %1031 = vmatprep.subr.mxu0 0.0
    %1032 = vmatpush1.msra.mxu0 0.0
    %1033 = vmatprep.subr.mxu0 0.0
    %1034 = vmatpush1.msra.mxu0 0.0
    %1035 = vmatprep.subr.mxu0 0.0
    %1036 = vmatpush1.msra.mxu0 0.0
    %1037 = vmatprep.subr.mxu0 0.0
    %1038 = vmatpush1.msra.mxu0 0.0
    %1039 = vmatprep.subr.mxu0 0.0
    %1040 = vmatpush1.msra.mxu0 0.0
    %1041 = vmatprep.subr.mxu0 0.0
    %1042 = vmatpush1.msra.mxu0 0.0
    %1043 = vmatprep.subr.mxu0 0.0
    %1044 = vmatpush1.msra.mxu0 0.0
    %1045 = vmatprep.subr.mxu0 0.0
    %1046 = vmatpush1.msra.mxu0 0.0
    %1047 = vmatprep.subr.mxu0 0.0
    %1048 = vmatpush1.msra.mxu0 %v65
    %1049 = vmatprep.subr.mxu0 0.0
    %1050 = vmatpush1.msra.mxu0 %v64
    %1051 = vmatprep.subr.mxu0 0.0
    %1052 = vmatpush1.msra.mxu0 %v63
    %1053 = vmatprep.subr.mxu0 0.0
    %1054 = vmatpush1.msra.mxu0 %v62
    %1055 = vmatprep.subr.mxu0 0.0
    %1056 = vmatpush2.msra.mxu0 0.0
    %1057 = vmatprep.subr.mxu0 0.0
    %1058 = vmatpush2.msra.mxu0 0.0
    %1059 = vmatprep.subr.mxu0 0.0
    %1060 = vmatpush2.msra.mxu0 0.0
    %1061 = vmatprep.subr.mxu0 0.0
    %1062 = vmatpush2.msra.mxu0 0.0
    %1063 = vmatprep.subr.mxu0 0.0
    %1064 = vmatpush2.msra.mxu0 0.0
    %1065 = vmatprep.subr.mxu0 0.0
    %1066 = vmatpush2.msra.mxu0 0.0
    %1067 = vmatprep.subr.mxu0 0.0
    %1068 = vmatpush2.msra.mxu0 0.0
    %1069 = vmatprep.subr.mxu0 0.0
    %1070 = vmatpush2.msra.mxu0 0.0
    %1071 = vmatprep.subr.mxu0 0.0
    %1072 = vmatpush2.msra.mxu0 0.0
    %1073 = vmatprep.subr.mxu0 0.0
    %1074 = vmatpush2.msra.mxu0 0.0
    %1075 = vmatprep.subr.mxu0 0.0
    %1076 = vmatpush2.msra.mxu0 0.0
    %1077 = vmatprep.subr.mxu0 0.0
    %1078 = vmatpush2.msra.mxu0 0.0
    %1079 = vmatprep.subr.mxu0 0.0
    %1080 = vmatpush2.msra.mxu0 0.0
    %1081 = vmatprep.subr.mxu0 0.0
    %1082 = vmatpush2.msra.mxu0 0.0
    %1083 = vmatprep.subr.mxu0 0.0
    %1084 = vmatpush2.msra.mxu0 0.0
    %1085 = vmatprep.subr.mxu0 0.0
    %1086 = vmatpush2.msra.mxu0 0.0
    %1087 = vmatprep.mubr.f32.mxu0 0.0
    %1088 = vmatmul.mubr.f32.gmra.mxu0 %v951
    %v1089 = vpop.f32.mrf.mxu0
    %v1090 = vadd.f32 0.0, %v1089
    %v1091 = vpop.f32.mrf.mxu0
    %1092 = vdwg.mxu0
    %v1093 = vadd.f32 %v166, %v1020
    %v1094 = vmul.f32 %v1093, 0.5
    %v1095 = vtanh.pop %v1094
    %v1096 = vadd.f32 %v1095, 1.0
    %v1097 = vmul.f32 %v1096, 0.5
    %1099 = vrot.lane.b32.xlu0 %v1090, 32
    %v1100 = vpop.permute.xlu0 %1099
    %v1102 = vadd.f32 %v166, %v1100
    %v1103 = vmul.f32 %v1102, 0.5
    %v1104 = vtanh.pop %v1103
    %v1105 = vadd.f32 %v1104, 1.0
    %v1106 = vmul.f32 %v1105, 0.5
    %1107 = vmatprep.subr.mxu0 0.0
    %1108 = vmatpush1.msra.mxu0 0.0
    %1109 = vmatprep.subr.mxu0 0.0
    %1110 = vmatpush1.msra.mxu0 0.0
    %1111 = vmatprep.subr.mxu0 0.0
    %1112 = vmatpush1.msra.mxu0 0.0
    %1113 = vmatprep.subr.mxu0 0.0
    %1114 = vmatpush1.msra.mxu0 0.0
    %1115 = vmatprep.subr.mxu0 0.0
    %1116 = vmatpush1.msra.mxu0 0.0
    %1117 = vmatprep.subr.mxu0 0.0
    %1118 = vmatpush1.msra.mxu0 0.0
    %1119 = vmatprep.subr.mxu0 0.0
    %1120 = vmatpush1.msra.mxu0 0.0
    %1121 = vmatprep.subr.mxu0 0.0
    %1122 = vmatpush1.msra.mxu0 0.0
    %1123 = vmatprep.subr.mxu0 0.0
    %1124 = vmatpush1.msra.mxu0 0.0
    %1125 = vmatprep.subr.mxu0 0.0
    %1126 = vmatpush1.msra.mxu0 0.0
    %1127 = vmatprep.subr.mxu0 0.0
    %1128 = vmatpush1.msra.mxu0 0.0
    %1129 = vmatprep.subr.mxu0 0.0
    %1130 = vmatpush1.msra.mxu0 0.0
    %1131 = vmatprep.subr.mxu0 0.0
    %1132 = vmatpush1.msra.mxu0 %v69
    %1133 = vmatprep.subr.mxu0 0.0
    %1134 = vmatpush1.msra.mxu0 %v68
    %1135 = vmatprep.subr.mxu0 0.0
    %1136 = vmatpush1.msra.mxu0 %v67
    %1137 = vmatprep.subr.mxu0 0.0
    %1138 = vmatpush1.msra.mxu0 %v66
    %1139 = vmatprep.subr.mxu0 0.0
    %1140 = vmatpush2.msra.mxu0 0.0
    %1141 = vmatprep.subr.mxu0 0.0
    %1142 = vmatpush2.msra.mxu0 0.0
    %1143 = vmatprep.subr.mxu0 0.0
    %1144 = vmatpush2.msra.mxu0 0.0
    %1145 = vmatprep.subr.mxu0 0.0
    %1146 = vmatpush2.msra.mxu0 0.0
    %1147 = vmatprep.subr.mxu0 0.0
    %1148 = vmatpush2.msra.mxu0 0.0
    %1149 = vmatprep.subr.mxu0 0.0
    %1150 = vmatpush2.msra.mxu0 0.0
    %1151 = vmatprep.subr.mxu0 0.0
    %1152 = vmatpush2.msra.mxu0 0.0
    %1153 = vmatprep.subr.mxu0 0.0
    %1154 = vmatpush2.msra.mxu0 0.0
    %1155 = vmatprep.subr.mxu0 0.0
    %1156 = vmatpush2.msra.mxu0 0.0
    %1157 = vmatprep.subr.mxu0 0.0
    %1158 = vmatpush2.msra.mxu0 0.0
    %1159 = vmatprep.subr.mxu0 0.0
    %1160 = vmatpush2.msra.mxu0 0.0
    %1161 = vmatprep.subr.mxu0 0.0
    %1162 = vmatpush2.msra.mxu0 0.0
    %1163 = vmatprep.subr.mxu0 0.0
    %1164 = vmatpush2.msra.mxu0 0.0
    %1165 = vmatprep.subr.mxu0 0.0
    %1166 = vmatpush2.msra.mxu0 0.0
    %1167 = vmatprep.subr.mxu0 0.0
    %1168 = vmatpush2.msra.mxu0 0.0
    %1169 = vmatprep.subr.mxu0 0.0
    %1170 = vmatpush2.msra.mxu0 0.0
    %1171 = vmatprep.mubr.f32.mxu0 0.0
    %1172 = vmatmul.mubr.f32.gmra.mxu0 %v951
    %v1173 = vpop.f32.mrf.mxu0
    %v1174 = vadd.f32 %v79, %v1173
    %v1175 = vpop.f32.mrf.mxu0
    %1176 = vdwg.mxu0
    %v1177 = vmul.f32 %v1097, %v1174
    %1179 = vrot.lane.b32.xlu0 %v1177, 64
    %v1180 = vpop.permute.xlu0 %1179
    %v1182 = vadd.f32 %v166, %v1180
    %v1183 = vtanh.pop %v1182
    %v1184 = vsub.f32 1.0, %v1106
    %1186 = vrot.lane.b32.xlu0 %v1183, 96
    %v1187 = vpop.permute.xlu0 %1186
    %v1189 = vmul.f32 %v1184, %v1187
    %v1191 = vmul.f32 %v1106, %v948
    %v1192 = vadd.f32 %v1189, %v1191
    %1194 = vrot.lane.b32.xlu0 %v1192, 96
    %v1195 = vpop.permute.xlu0 %1194
    %v1196 = vsel %vm87, %v1195, 0
    %1198 = vmatprep.subr.mxu0 0.0
    %1199 = vmatpush1.msra.mxu0 0.0
    %1200 = vmatprep.subr.mxu0 0.0
    %1201 = vmatpush1.msra.mxu0 0.0
    %1202 = vmatprep.subr.mxu0 0.0
    %1203 = vmatpush1.msra.mxu0 0.0
    %1204 = vmatprep.subr.mxu0 0.0
    %1205 = vmatpush1.msra.mxu0 0.0
    %1206 = vmatprep.subr.mxu0 0.0
    %1207 = vmatpush1.msra.mxu0 0.0
    %1208 = vmatprep.subr.mxu0 0.0
    %1209 = vmatpush1.msra.mxu0 0.0
    %1210 = vmatprep.subr.mxu0 0.0
    %1211 = vmatpush1.msra.mxu0 0.0
    %1212 = vmatprep.subr.mxu0 0.0
    %1213 = vmatpush1.msra.mxu0 0.0
    %1214 = vmatprep.subr.mxu0 0.0
    %1215 = vmatpush1.msra.mxu0 0.0
    %1216 = vmatprep.subr.mxu0 0.0
    %1217 = vmatpush1.msra.mxu0 0.0
    %1218 = vmatprep.subr.mxu0 0.0
    %1219 = vmatpush1.msra.mxu0 0.0
    %1220 = vmatprep.subr.mxu0 0.0
    %1221 = vmatpush1.msra.mxu0 0.0
    %1222 = vmatprep.subr.mxu0 0.0
    %1223 = vmatpush1.msra.mxu0 %v61
    %1224 = vmatprep.subr.mxu0 0.0
    %1225 = vmatpush1.msra.mxu0 %v60
    %1226 = vmatprep.subr.mxu0 0.0
    %1227 = vmatpush1.msra.mxu0 %v59
    %1228 = vmatprep.subr.mxu0 0.0
    %1229 = vmatpush1.msra.mxu0 %v58
    %1230 = vmatprep.subr.mxu0 0.0
    %1231 = vmatpush2.msra.mxu0 0.0
    %1232 = vmatprep.subr.mxu0 0.0
    %1233 = vmatpush2.msra.mxu0 0.0
    %1234 = vmatprep.subr.mxu0 0.0
    %1235 = vmatpush2.msra.mxu0 0.0
    %1236 = vmatprep.subr.mxu0 0.0
    %1237 = vmatpush2.msra.mxu0 0.0
    %1238 = vmatprep.subr.mxu0 0.0
    %1239 = vmatpush2.msra.mxu0 0.0
    %1240 = vmatprep.subr.mxu0 0.0
    %1241 = vmatpush2.msra.mxu0 0.0
    %1242 = vmatprep.subr.mxu0 0.0
    %1243 = vmatpush2.msra.mxu0 0.0
    %1244 = vmatprep.subr.mxu0 0.0
    %1245 = vmatpush2.msra.mxu0 0.0
    %1246 = vmatprep.subr.mxu0 0.0
    %1247 = vmatpush2.msra.mxu0 0.0
    %1248 = vmatprep.subr.mxu0 0.0
    %1249 = vmatpush2.msra.mxu0 0.0
    %1250 = vmatprep.subr.mxu0 0.0
    %1251 = vmatpush2.msra.mxu0 0.0
    %1252 = vmatprep.subr.mxu0 0.0
    %1253 = vmatpush2.msra.mxu0 0.0
    %1254 = vmatprep.subr.mxu0 0.0
    %1255 = vmatpush2.msra.mxu0 0.0
    %1256 = vmatprep.subr.mxu0 0.0
    %1257 = vmatpush2.msra.mxu0 0.0
    %1258 = vmatprep.subr.mxu0 0.0
    %1259 = vmatpush2.msra.mxu0 0.0
    %1260 = vmatprep.subr.mxu0 0.0
    %1261 = vmatpush2.msra.mxu0 0.0
    %1262 = vmatprep.mubr.f32.mxu0 0.0
    %1263 = vmatmul.mubr.f32.gmra.mxu0 %v1196
    %v1264 = vpop.f32.mrf.mxu0
    %v1265 = vadd.f32 0.0, %v1264
    %v1266 = vpop.f32.mrf.mxu0
    %1267 = vdwg.mxu0
    %1268 = vmatprep.subr.mxu0 0.0
    %1269 = vmatpush1.msra.mxu0 0.0
    %1270 = vmatprep.subr.mxu0 0.0
    %1271 = vmatpush1.msra.mxu0 0.0
    %1272 = vmatprep.subr.mxu0 0.0
    %1273 = vmatpush1.msra.mxu0 0.0
    %1274 = vmatprep.subr.mxu0 0.0
    %1275 = vmatpush1.msra.mxu0 0.0
    %1276 = vmatprep.subr.mxu0 0.0
    %1277 = vmatpush1.msra.mxu0 0.0
    %1278 = vmatprep.subr.mxu0 0.0
    %1279 = vmatpush1.msra.mxu0 0.0
    %1280 = vmatprep.subr.mxu0 0.0
    %1281 = vmatpush1.msra.mxu0 0.0
    %1282 = vmatprep.subr.mxu0 0.0
    %1283 = vmatpush1.msra.mxu0 0.0
    %1284 = vmatprep.subr.mxu0 0.0
    %1285 = vmatpush1.msra.mxu0 0.0
    %1286 = vmatprep.subr.mxu0 0.0
    %1287 = vmatpush1.msra.mxu0 0.0
    %1288 = vmatprep.subr.mxu0 0.0
    %1289 = vmatpush1.msra.mxu0 0.0
    %1290 = vmatprep.subr.mxu0 0.0
    %1291 = vmatpush1.msra.mxu0 0.0
    %1292 = vmatprep.subr.mxu0 0.0
    %1293 = vmatpush1.msra.mxu0 %v65
    %1294 = vmatprep.subr.mxu0 0.0
    %1295 = vmatpush1.msra.mxu0 %v64
    %1296 = vmatprep.subr.mxu0 0.0
    %1297 = vmatpush1.msra.mxu0 %v63
    %1298 = vmatprep.subr.mxu0 0.0
    %1299 = vmatpush1.msra.mxu0 %v62
    %1300 = vmatprep.subr.mxu0 0.0
    %1301 = vmatpush2.msra.mxu0 0.0
    %1302 = vmatprep.subr.mxu0 0.0
    %1303 = vmatpush2.msra.mxu0 0.0
    %1304 = vmatprep.subr.mxu0 0.0
    %1305 = vmatpush2.msra.mxu0 0.0
    %1306 = vmatprep.subr.mxu0 0.0
    %1307 = vmatpush2.msra.mxu0 0.0
    %1308 = vmatprep.subr.mxu0 0.0
    %1309 = vmatpush2.msra.mxu0 0.0
    %1310 = vmatprep.subr.mxu0 0.0
    %1311 = vmatpush2.msra.mxu0 0.0
    %1312 = vmatprep.subr.mxu0 0.0
    %1313 = vmatpush2.msra.mxu0 0.0
    %1314 = vmatprep.subr.mxu0 0.0
    %1315 = vmatpush2.msra.mxu0 0.0
    %1316 = vmatprep.subr.mxu0 0.0
    %1317 = vmatpush2.msra.mxu0 0.0
    %1318 = vmatprep.subr.mxu0 0.0
    %1319 = vmatpush2.msra.mxu0 0.0
    %1320 = vmatprep.subr.mxu0 0.0
    %1321 = vmatpush2.msra.mxu0 0.0
    %1322 = vmatprep.subr.mxu0 0.0
    %1323 = vmatpush2.msra.mxu0 0.0
    %1324 = vmatprep.subr.mxu0 0.0
    %1325 = vmatpush2.msra.mxu0 0.0
    %1326 = vmatprep.subr.mxu0 0.0
    %1327 = vmatpush2.msra.mxu0 0.0
    %1328 = vmatprep.subr.mxu0 0.0
    %1329 = vmatpush2.msra.mxu0 0.0
    %1330 = vmatprep.subr.mxu0 0.0
    %1331 = vmatpush2.msra.mxu0 0.0
    %1332 = vmatprep.mubr.f32.mxu0 0.0
    %1333 = vmatmul.mubr.f32.gmra.mxu0 %v1196
    %v1334 = vpop.f32.mrf.mxu0
    %v1335 = vadd.f32 0.0, %v1334
    %v1336 = vpop.f32.mrf.mxu0
    %1337 = vdwg.mxu0
    %v1339 = vrot.slane %v1265, 6
    %v1341 = vadd.f32 %v166, %v1339
    %v1342 = vmul.f32 %v1341, 0.5
    %v1343 = vtanh.pop %v1342
    %v1344 = vadd.f32 %v1343, 1.0
    %v1345 = vmul.f32 %v1344, 0.5
    %v1347 = vrot.slane %v1335, 6
    %1348 = vrot.lane.b32.xlu0 %v1347, 32
    %v1349 = vpop.permute.xlu0 %1348
    %v1351 = vadd.f32 %v166, %v1349
    %v1352 = vmul.f32 %v1351, 0.5
    %v1353 = vtanh.pop %v1352
    %v1354 = vadd.f32 %v1353, 1.0
    %v1355 = vmul.f32 %v1354, 0.5
    %1356 = vmatprep.subr.mxu0 0.0
    %1357 = vmatpush1.msra.mxu0 0.0
    %1358 = vmatprep.subr.mxu0 0.0
    %1359 = vmatpush1.msra.mxu0 0.0
    %1360 = vmatprep.subr.mxu0 0.0
    %1361 = vmatpush1.msra.mxu0 0.0
    %1362 = vmatprep.subr.mxu0 0.0
    %1363 = vmatpush1.msra.mxu0 0.0
    %1364 = vmatprep.subr.mxu0 0.0
    %1365 = vmatpush1.msra.mxu0 0.0
    %1366 = vmatprep.subr.mxu0 0.0
    %1367 = vmatpush1.msra.mxu0 0.0
    %1368 = vmatprep.subr.mxu0 0.0
    %1369 = vmatpush1.msra.mxu0 0.0
    %1370 = vmatprep.subr.mxu0 0.0
    %1371 = vmatpush1.msra.mxu0 0.0
    %1372 = vmatprep.subr.mxu0 0.0
    %1373 = vmatpush1.msra.mxu0 0.0
    %1374 = vmatprep.subr.mxu0 0.0
    %1375 = vmatpush1.msra.mxu0 0.0
    %1376 = vmatprep.subr.mxu0 0.0
    %1377 = vmatpush1.msra.mxu0 0.0
    %1378 = vmatprep.subr.mxu0 0.0
    %1379 = vmatpush1.msra.mxu0 0.0
    %1380 = vmatprep.subr.mxu0 0.0
    %1381 = vmatpush1.msra.mxu0 %v69
    %1382 = vmatprep.subr.mxu0 0.0
    %1383 = vmatpush1.msra.mxu0 %v68
    %1384 = vmatprep.subr.mxu0 0.0
    %1385 = vmatpush1.msra.mxu0 %v67
    %1386 = vmatprep.subr.mxu0 0.0
    %1387 = vmatpush1.msra.mxu0 %v66
    %1388 = vmatprep.subr.mxu0 0.0
    %1389 = vmatpush2.msra.mxu0 0.0
    %1390 = vmatprep.subr.mxu0 0.0
    %1391 = vmatpush2.msra.mxu0 0.0
    %1392 = vmatprep.subr.mxu0 0.0
    %1393 = vmatpush2.msra.mxu0 0.0
    %1394 = vmatprep.subr.mxu0 0.0
    %1395 = vmatpush2.msra.mxu0 0.0
    %1396 = vmatprep.subr.mxu0 0.0
    %1397 = vmatpush2.msra.mxu0 0.0
    %1398 = vmatprep.subr.mxu0 0.0
    %1399 = vmatpush2.msra.mxu0 0.0
    %1400 = vmatprep.subr.mxu0 0.0
    %1401 = vmatpush2.msra.mxu0 0.0
    %1402 = vmatprep.subr.mxu0 0.0
    %1403 = vmatpush2.msra.mxu0 0.0
    %1404 = vmatprep.subr.mxu0 0.0
    %1405 = vmatpush2.msra.mxu0 0.0
    %1406 = vmatprep.subr.mxu0 0.0
    %1407 = vmatpush2.msra.mxu0 0.0
    %1408 = vmatprep.subr.mxu0 0.0
    %1409 = vmatpush2.msra.mxu0 0.0
    %1410 = vmatprep.subr.mxu0 0.0
    %1411 = vmatpush2.msra.mxu0 0.0
    %1412 = vmatprep.subr.mxu0 0.0
    %1413 = vmatpush2.msra.mxu0 0.0
    %1414 = vmatprep.subr.mxu0 0.0
    %1415 = vmatpush2.msra.mxu0 0.0
    %1416 = vmatprep.subr.mxu0 0.0
    %1417 = vmatpush2.msra.mxu0 0.0
    %1418 = vmatprep.subr.mxu0 0.0
    %1419 = vmatpush2.msra.mxu0 0.0
    %1420 = vmatprep.mubr.f32.mxu0 0.0
    %1421 = vmatmul.mubr.f32.gmra.mxu0 %v1196
    %v1422 = vpop.f32.mrf.mxu0
    %v1423 = vadd.f32 %v79, %v1422
    %v1424 = vpop.f32.mrf.mxu0
    %1425 = vdwg.mxu0
    %v1427 = vrot.slane %v1423, 6
    %v1429 = vmul.f32 %v1345, %v1427
    %1431 = vrot.lane.b32.xlu0 %v1429, 64
    %v1432 = vpop.permute.xlu0 %1431
    %v1434 = vadd.f32 %v166, %v1432
    %v1435 = vtanh.pop %v1434
    %v1436 = vsub.f32 1.0, %v1355
    %1438 = vrot.lane.b32.xlu0 %v1435, 96
    %v1439 = vpop.permute.xlu0 %1438
    %v1441 = vmul.f32 %v1436, %v1439
    %v1442 = vrot.slane %v1192, 6
    %v1444 = vmul.f32 %v1355, %v1442
    %v1445 = vadd.f32 %v1441, %v1444
    %v1447 = vrot.slane %v1445, 2
    %1448 = vrot.lane.b32.xlu0 %v1447, 96
    %v1449 = vpop.permute.xlu0 %1448
    %v1450 = vsel %vm87, %v1449, 0
    %1452 = vmatprep.subr.mxu0 0.0
    %1453 = vmatpush1.msra.mxu0 0.0
    %1454 = vmatprep.subr.mxu0 0.0
    %1455 = vmatpush1.msra.mxu0 0.0
    %1456 = vmatprep.subr.mxu0 0.0
    %1457 = vmatpush1.msra.mxu0 0.0
    %1458 = vmatprep.subr.mxu0 0.0
    %1459 = vmatpush1.msra.mxu0 0.0
    %1460 = vmatprep.subr.mxu0 0.0
    %1461 = vmatpush1.msra.mxu0 0.0
    %1462 = vmatprep.subr.mxu0 0.0
    %1463 = vmatpush1.msra.mxu0 0.0
    %1464 = vmatprep.subr.mxu0 0.0
    %1465 = vmatpush1.msra.mxu0 0.0
    %1466 = vmatprep.subr.mxu0 0.0
    %1467 = vmatpush1.msra.mxu0 0.0
    %1468 = vmatprep.subr.mxu0 0.0
    %1469 = vmatpush1.msra.mxu0 0.0
    %1470 = vmatprep.subr.mxu0 0.0
    %1471 = vmatpush1.msra.mxu0 0.0
    %1472 = vmatprep.subr.mxu0 0.0
    %1473 = vmatpush1.msra.mxu0 0.0
    %1474 = vmatprep.subr.mxu0 0.0
    %1475 = vmatpush1.msra.mxu0 0.0
    %1476 = vmatprep.subr.mxu0 0.0
    %1477 = vmatpush1.msra.mxu0 %v61
    %1478 = vmatprep.subr.mxu0 0.0
    %1479 = vmatpush1.msra.mxu0 %v60
    %1480 = vmatprep.subr.mxu0 0.0
    %1481 = vmatpush1.msra.mxu0 %v59
    %1482 = vmatprep.subr.mxu0 0.0
    %1483 = vmatpush1.msra.mxu0 %v58
    %1484 = vmatprep.subr.mxu0 0.0
    %1485 = vmatpush2.msra.mxu0 0.0
    %1486 = vmatprep.subr.mxu0 0.0
    %1487 = vmatpush2.msra.mxu0 0.0
    %1488 = vmatprep.subr.mxu0 0.0
    %1489 = vmatpush2.msra.mxu0 0.0
    %1490 = vmatprep.subr.mxu0 0.0
    %1491 = vmatpush2.msra.mxu0 0.0
    %1492 = vmatprep.subr.mxu0 0.0
    %1493 = vmatpush2.msra.mxu0 0.0
    %1494 = vmatprep.subr.mxu0 0.0
    %1495 = vmatpush2.msra.mxu0 0.0
    %1496 = vmatprep.subr.mxu0 0.0
    %1497 = vmatpush2.msra.mxu0 0.0
    %1498 = vmatprep.subr.mxu0 0.0
    %1499 = vmatpush2.msra.mxu0 0.0
    %1500 = vmatprep.subr.mxu0 0.0
    %1501 = vmatpush2.msra.mxu0 0.0
    %1502 = vmatprep.subr.mxu0 0.0
    %1503 = vmatpush2.msra.mxu0 0.0
    %1504 = vmatprep.subr.mxu0 0.0
    %1505 = vmatpush2.msra.mxu0 0.0
    %1506 = vmatprep.subr.mxu0 0.0
    %1507 = vmatpush2.msra.mxu0 0.0
    %1508 = vmatprep.subr.mxu0 0.0
    %1509 = vmatpush2.msra.mxu0 0.0
    %1510 = vmatprep.subr.mxu0 0.0
    %1511 = vmatpush2.msra.mxu0 0.0
    %1512 = vmatprep.subr.mxu0 0.0
    %1513 = vmatpush2.msra.mxu0 0.0
    %1514 = vmatprep.subr.mxu0 0.0
    %1515 = vmatpush2.msra.mxu0 0.0
    %1516 = vmatprep.mubr.f32.mxu0 0.0
    %1517 = vmatmul.mubr.f32.gmra.mxu0 %v1450
    %v1518 = vpop.f32.mrf.mxu0
    %v1519 = vadd.f32 0.0, %v1518
    %v1520 = vpop.f32.mrf.mxu0
    %1521 = vdwg.mxu0
    %1522 = vmatprep.subr.mxu0 0.0
    %1523 = vmatpush1.msra.mxu0 0.0
    %1524 = vmatprep.subr.mxu0 0.0
    %1525 = vmatpush1.msra.mxu0 0.0
    %1526 = vmatprep.subr.mxu0 0.0
    %1527 = vmatpush1.msra.mxu0 0.0
    %1528 = vmatprep.subr.mxu0 0.0
    %1529 = vmatpush1.msra.mxu0 0.0
    %1530 = vmatprep.subr.mxu0 0.0
    %1531 = vmatpush1.msra.mxu0 0.0
    %1532 = vmatprep.subr.mxu0 0.0
    %1533 = vmatpush1.msra.mxu0 0.0
    %1534 = vmatprep.subr.mxu0 0.0
    %1535 = vmatpush1.msra.mxu0 0.0
    %1536 = vmatprep.subr.mxu0 0.0
    %1537 = vmatpush1.msra.mxu0 0.0
    %1538 = vmatprep.subr.mxu0 0.0
    %1539 = vmatpush1.msra.mxu0 0.0
    %1540 = vmatprep.subr.mxu0 0.0
    %1541 = vmatpush1.msra.mxu0 0.0
    %1542 = vmatprep.subr.mxu0 0.0
    %1543 = vmatpush1.msra.mxu0 0.0
    %1544 = vmatprep.subr.mxu0 0.0
    %1545 = vmatpush1.msra.mxu0 0.0
    %1546 = vmatprep.subr.mxu0 0.0
    %1547 = vmatpush1.msra.mxu0 %v65
    %1548 = vmatprep.subr.mxu0 0.0
    %1549 = vmatpush1.msra.mxu0 %v64
    %1550 = vmatprep.subr.mxu0 0.0
    %1551 = vmatpush1.msra.mxu0 %v63
    %1552 = vmatprep.subr.mxu0 0.0
    %1553 = vmatpush1.msra.mxu0 %v62
    %1554 = vmatprep.subr.mxu0 0.0
    %1555 = vmatpush2.msra.mxu0 0.0
    %1556 = vmatprep.subr.mxu0 0.0
    %1557 = vmatpush2.msra.mxu0 0.0
    %1558 = vmatprep.subr.mxu0 0.0
    %1559 = vmatpush2.msra.mxu0 0.0
    %1560 = vmatprep.subr.mxu0 0.0
    %1561 = vmatpush2.msra.mxu0 0.0
    %1562 = vmatprep.subr.mxu0 0.0
    %1563 = vmatpush2.msra.mxu0 0.0
    %1564 = vmatprep.subr.mxu0 0.0
    %1565 = vmatpush2.msra.mxu0 0.0
    %1566 = vmatprep.subr.mxu0 0.0
    %1567 = vmatpush2.msra.mxu0 0.0
    %1568 = vmatprep.subr.mxu0 0.0
    %1569 = vmatpush2.msra.mxu0 0.0
    %1570 = vmatprep.subr.mxu0 0.0
    %1571 = vmatpush2.msra.mxu0 0.0
    %1572 = vmatprep.subr.mxu0 0.0
    %1573 = vmatpush2.msra.mxu0 0.0
    %1574 = vmatprep.subr.mxu0 0.0
    %1575 = vmatpush2.msra.mxu0 0.0
    %1576 = vmatprep.subr.mxu0 0.0
    %1577 = vmatpush2.msra.mxu0 0.0
    %1578 = vmatprep.subr.mxu0 0.0
    %1579 = vmatpush2.msra.mxu0 0.0
    %1580 = vmatprep.subr.mxu0 0.0
    %1581 = vmatpush2.msra.mxu0 0.0
    %1582 = vmatprep.subr.mxu0 0.0
    %1583 = vmatpush2.msra.mxu0 0.0
    %1584 = vmatprep.subr.mxu0 0.0
    %1585 = vmatpush2.msra.mxu0 0.0
    %1586 = vmatprep.mubr.f32.mxu0 0.0
    %1587 = vmatmul.mubr.f32.gmra.mxu0 %v1450
    %v1588 = vpop.f32.mrf.mxu0
    %v1589 = vadd.f32 0.0, %v1588
    %v1590 = vpop.f32.mrf.mxu0
    %1591 = vdwg.mxu0
    %v1593 = vrot.slane %v1519, 4
    %v1595 = vadd.f32 %v166, %v1593
    %v1596 = vmul.f32 %v1595, 0.5
    %v1597 = vtanh.pop %v1596
    %v1598 = vadd.f32 %v1597, 1.0
    %v1599 = vmul.f32 %v1598, 0.5
    %v1601 = vrot.slane %v1589, 4
    %1602 = vrot.lane.b32.xlu0 %v1601, 32
    %v1603 = vpop.permute.xlu0 %1602
    %v1605 = vadd.f32 %v166, %v1603
    %v1606 = vmul.f32 %v1605, 0.5
    %v1607 = vtanh.pop %v1606
    %v1608 = vadd.f32 %v1607, 1.0
    %v1609 = vmul.f32 %v1608, 0.5
    %1610 = vmatprep.subr.mxu0 0.0
    %1611 = vmatpush1.msra.mxu0 0.0
    %1612 = vmatprep.subr.mxu0 0.0
    %1613 = vmatpush1.msra.mxu0 0.0
    %1614 = vmatprep.subr.mxu0 0.0
    %1615 = vmatpush1.msra.mxu0 0.0
    %1616 = vmatprep.subr.mxu0 0.0
    %1617 = vmatpush1.msra.mxu0 0.0
    %1618 = vmatprep.subr.mxu0 0.0
    %1619 = vmatpush1.msra.mxu0 0.0
    %1620 = vmatprep.subr.mxu0 0.0
    %1621 = vmatpush1.msra.mxu0 0.0
    %1622 = vmatprep.subr.mxu0 0.0
    %1623 = vmatpush1.msra.mxu0 0.0
    %1624 = vmatprep.subr.mxu0 0.0
    %1625 = vmatpush1.msra.mxu0 0.0
    %1626 = vmatprep.subr.mxu0 0.0
    %1627 = vmatpush1.msra.mxu0 0.0
    %1628 = vmatprep.subr.mxu0 0.0
    %1629 = vmatpush1.msra.mxu0 0.0
    %1630 = vmatprep.subr.mxu0 0.0
    %1631 = vmatpush1.msra.mxu0 0.0
    %1632 = vmatprep.subr.mxu0 0.0
    %1633 = vmatpush1.msra.mxu0 0.0
    %1634 = vmatprep.subr.mxu0 0.0
    %1635 = vmatpush1.msra.mxu0 %v69
    %1636 = vmatprep.subr.mxu0 0.0
    %1637 = vmatpush1.msra.mxu0 %v68
    %1638 = vmatprep.subr.mxu0 0.0
    %1639 = vmatpush1.msra.mxu0 %v67
    %1640 = vmatprep.subr.mxu0 0.0
    %1641 = vmatpush1.msra.mxu0 %v66
    %1642 = vmatprep.subr.mxu0 0.0
    %1643 = vmatpush2.msra.mxu0 0.0
    %1644 = vmatprep.subr.mxu0 0.0
    %1645 = vmatpush2.msra.mxu0 0.0
    %1646 = vmatprep.subr.mxu0 0.0
    %1647 = vmatpush2.msra.mxu0 0.0
    %1648 = vmatprep.subr.mxu0 0.0
    %1649 = vmatpush2.msra.mxu0 0.0
    %1650 = vmatprep.subr.mxu0 0.0
    %1651 = vmatpush2.msra.mxu0 0.0
    %1652 = vmatprep.subr.mxu0 0.0
    %1653 = vmatpush2.msra.mxu0 0.0
    %1654 = vmatprep.subr.mxu0 0.0
    %1655 = vmatpush2.msra.mxu0 0.0
    %1656 = vmatprep.subr.mxu0 0.0
    %1657 = vmatpush2.msra.mxu0 0.0
    %1658 = vmatprep.subr.mxu0 0.0
    %1659 = vmatpush2.msra.mxu0 0.0
    %1660 = vmatprep.subr.mxu0 0.0
    %1661 = vmatpush2.msra.mxu0 0.0
    %1662 = vmatprep.subr.mxu0 0.0
    %1663 = vmatpush2.msra.mxu0 0.0
    %1664 = vmatprep.subr.mxu0 0.0
    %1665 = vmatpush2.msra.mxu0 0.0
    %1666 = vmatprep.subr.mxu0 0.0
    %1667 = vmatpush2.msra.mxu0 0.0
    %1668 = vmatprep.subr.mxu0 0.0
    %1669 = vmatpush2.msra.mxu0 0.0
    %1670 = vmatprep.subr.mxu0 0.0
    %1671 = vmatpush2.msra.mxu0 0.0
    %1672 = vmatprep.subr.mxu0 0.0
    %1673 = vmatpush2.msra.mxu0 0.0
    %1674 = vmatprep.mubr.f32.mxu0 0.0
    %1675 = vmatmul.mubr.f32.gmra.mxu0 %v1450
    %v1676 = vpop.f32.mrf.mxu0
    %v1677 = vadd.f32 %v79, %v1676
    %v1678 = vpop.f32.mrf.mxu0
    %1679 = vdwg.mxu0
    %v1681 = vrot.slane %v1677, 4
    %v1683 = vmul.f32 %v1599, %v1681
    %1685 = vrot.lane.b32.xlu0 %v1683, 64
    %v1686 = vpop.permute.xlu0 %1685
    %v1688 = vadd.f32 %v166, %v1686
    %v1689 = vtanh.pop %v1688
    %v1690 = vsub.f32 1.0, %v1609
    %1692 = vrot.lane.b32.xlu0 %v1689, 96
    %v1693 = vpop.permute.xlu0 %1692
    %v1695 = vmul.f32 %v1690, %v1693
    %v1696 = vrot.slane %v1445, 6
    %v1698 = vmul.f32 %v1609, %v1696
    %v1699 = vadd.f32 %v1695, %v1698
    %v1701 = vrot.slane %v1699, 4
    %1702 = vrot.lane.b32.xlu0 %v1701, 96
    %v1703 = vpop.permute.xlu0 %1702
    %v1704 = vsel %vm87, %v1703, 0
    %1706 = vmatprep.subr.mxu0 0.0
    %1707 = vmatpush1.msra.mxu0 0.0
    %1708 = vmatprep.subr.mxu0 0.0
    %1709 = vmatpush1.msra.mxu0 0.0
    %1710 = vmatprep.subr.mxu0 0.0
    %1711 = vmatpush1.msra.mxu0 0.0
    %1712 = vmatprep.subr.mxu0 0.0
    %1713 = vmatpush1.msra.mxu0 0.0
    %1714 = vmatprep.subr.mxu0 0.0
    %1715 = vmatpush1.msra.mxu0 0.0
    %1716 = vmatprep.subr.mxu0 0.0
    %1717 = vmatpush1.msra.mxu0 0.0
    %1718 = vmatprep.subr.mxu0 0.0
    %1719 = vmatpush1.msra.mxu0 0.0
    %1720 = vmatprep.subr.mxu0 0.0
    %1721 = vmatpush1.msra.mxu0 0.0
    %1722 = vmatprep.subr.mxu0 0.0
    %1723 = vmatpush1.msra.mxu0 0.0
    %1724 = vmatprep.subr.mxu0 0.0
    %1725 = vmatpush1.msra.mxu0 0.0
    %1726 = vmatprep.subr.mxu0 0.0
    %1727 = vmatpush1.msra.mxu0 0.0
    %1728 = vmatprep.subr.mxu0 0.0
    %1729 = vmatpush1.msra.mxu0 0.0
    %1730 = vmatprep.subr.mxu0 0.0
    %1731 = vmatpush1.msra.mxu0 %v61
    %1732 = vmatprep.subr.mxu0 0.0
    %1733 = vmatpush1.msra.mxu0 %v60
    %1734 = vmatprep.subr.mxu0 0.0
    %1735 = vmatpush1.msra.mxu0 %v59
    %1736 = vmatprep.subr.mxu0 0.0
    %1737 = vmatpush1.msra.mxu0 %v58
    %1738 = vmatprep.subr.mxu0 0.0
    %1739 = vmatpush2.msra.mxu0 0.0
    %1740 = vmatprep.subr.mxu0 0.0
    %1741 = vmatpush2.msra.mxu0 0.0
    %1742 = vmatprep.subr.mxu0 0.0
    %1743 = vmatpush2.msra.mxu0 0.0
    %1744 = vmatprep.subr.mxu0 0.0
    %1745 = vmatpush2.msra.mxu0 0.0
    %1746 = vmatprep.subr.mxu0 0.0
    %1747 = vmatpush2.msra.mxu0 0.0
    %1748 = vmatprep.subr.mxu0 0.0
    %1749 = vmatpush2.msra.mxu0 0.0
    %1750 = vmatprep.subr.mxu0 0.0
    %1751 = vmatpush2.msra.mxu0 0.0
    %1752 = vmatprep.subr.mxu0 0.0
    %1753 = vmatpush2.msra.mxu0 0.0
    %1754 = vmatprep.subr.mxu0 0.0
    %1755 = vmatpush2.msra.mxu0 0.0
    %1756 = vmatprep.subr.mxu0 0.0
    %1757 = vmatpush2.msra.mxu0 0.0
    %1758 = vmatprep.subr.mxu0 0.0
    %1759 = vmatpush2.msra.mxu0 0.0
    %1760 = vmatprep.subr.mxu0 0.0
    %1761 = vmatpush2.msra.mxu0 0.0
    %1762 = vmatprep.subr.mxu0 0.0
    %1763 = vmatpush2.msra.mxu0 0.0
    %1764 = vmatprep.subr.mxu0 0.0
    %1765 = vmatpush2.msra.mxu0 0.0
    %1766 = vmatprep.subr.mxu0 0.0
    %1767 = vmatpush2.msra.mxu0 0.0
    %1768 = vmatprep.subr.mxu0 0.0
    %1769 = vmatpush2.msra.mxu0 0.0
    %1770 = vmatprep.mubr.f32.mxu0 0.0
    %1771 = vmatmul.mubr.f32.gmra.mxu0 %v1704
    %v1772 = vpop.f32.mrf.mxu0
    %v1773 = vadd.f32 0.0, %v1772
    %v1774 = vpop.f32.mrf.mxu0
    %1775 = vdwg.mxu0
    %1776 = vmatprep.subr.mxu0 0.0
    %1777 = vmatpush1.msra.mxu0 0.0
    %1778 = vmatprep.subr.mxu0 0.0
    %1779 = vmatpush1.msra.mxu0 0.0
    %1780 = vmatprep.subr.mxu0 0.0
    %1781 = vmatpush1.msra.mxu0 0.0
    %1782 = vmatprep.subr.mxu0 0.0
    %1783 = vmatpush1.msra.mxu0 0.0
    %1784 = vmatprep.subr.mxu0 0.0
    %1785 = vmatpush1.msra.mxu0 0.0
    %1786 = vmatprep.subr.mxu0 0.0
    %1787 = vmatpush1.msra.mxu0 0.0
    %1788 = vmatprep.subr.mxu0 0.0
    %1789 = vmatpush1.msra.mxu0 0.0
    %1790 = vmatprep.subr.mxu0 0.0
    %1791 = vmatpush1.msra.mxu0 0.0
    %1792 = vmatprep.subr.mxu0 0.0
    %1793 = vmatpush1.msra.mxu0 0.0
    %1794 = vmatprep.subr.mxu0 0.0
    %1795 = vmatpush1.msra.mxu0 0.0
    %1796 = vmatprep.subr.mxu0 0.0
    %1797 = vmatpush1.msra.mxu0 0.0
    %1798 = vmatprep.subr.mxu0 0.0
    %1799 = vmatpush1.msra.mxu0 0.0
    %1800 = vmatprep.subr.mxu0 0.0
    %1801 = vmatpush1.msra.mxu0 %v65
    %1802 = vmatprep.subr.mxu0 0.0
    %1803 = vmatpush1.msra.mxu0 %v64
    %1804 = vmatprep.subr.mxu0 0.0
    %1805 = vmatpush1.msra.mxu0 %v63
    %1806 = vmatprep.subr.mxu0 0.0
    %1807 = vmatpush1.msra.mxu0 %v62
    %1808 = vmatprep.subr.mxu0 0.0
    %1809 = vmatpush2.msra.mxu0 0.0
    %1810 = vmatprep.subr.mxu0 0.0
    %1811 = vmatpush2.msra.mxu0 0.0
    %1812 = vmatprep.subr.mxu0 0.0
    %1813 = vmatpush2.msra.mxu0 0.0
    %1814 = vmatprep.subr.mxu0 0.0
    %1815 = vmatpush2.msra.mxu0 0.0
    %1816 = vmatprep.subr.mxu0 0.0
    %1817 = vmatpush2.msra.mxu0 0.0
    %1818 = vmatprep.subr.mxu0 0.0
    %1819 = vmatpush2.msra.mxu0 0.0
    %1820 = vmatprep.subr.mxu0 0.0
    %1821 = vmatpush2.msra.mxu0 0.0
    %1822 = vmatprep.subr.mxu0 0.0
    %1823 = vmatpush2.msra.mxu0 0.0
    %1824 = vmatprep.subr.mxu0 0.0
    %1825 = vmatpush2.msra.mxu0 0.0
    %1826 = vmatprep.subr.mxu0 0.0
    %1827 = vmatpush2.msra.mxu0 0.0
    %1828 = vmatprep.subr.mxu0 0.0
    %1829 = vmatpush2.msra.mxu0 0.0
    %1830 = vmatprep.subr.mxu0 0.0
    %1831 = vmatpush2.msra.mxu0 0.0
    %1832 = vmatprep.subr.mxu0 0.0
    %1833 = vmatpush2.msra.mxu0 0.0
    %1834 = vmatprep.subr.mxu0 0.0
    %1835 = vmatpush2.msra.mxu0 0.0
    %1836 = vmatprep.subr.mxu0 0.0
    %1837 = vmatpush2.msra.mxu0 0.0
    %1838 = vmatprep.subr.mxu0 0.0
    %1839 = vmatpush2.msra.mxu0 0.0
    %1840 = vmatprep.mubr.f32.mxu0 0.0
    %1841 = vmatmul.mubr.f32.gmra.mxu0 %v1704
    %v1842 = vpop.f32.mrf.mxu0
    %v1843 = vadd.f32 0.0, %v1842
    %v1844 = vpop.f32.mrf.mxu0
    %1845 = vdwg.mxu0
    %v1847 = vrot.slane %v1773, 2
    %v1849 = vadd.f32 %v166, %v1847
    %v1850 = vmul.f32 %v1849, 0.5
    %v1851 = vtanh.pop %v1850
    %v1852 = vadd.f32 %v1851, 1.0
    %v1853 = vmul.f32 %v1852, 0.5
    %v1855 = vrot.slane %v1843, 2
    %1856 = vrot.lane.b32.xlu0 %v1855, 32
    %v1857 = vpop.permute.xlu0 %1856
    %v1859 = vadd.f32 %v166, %v1857
    %v1860 = vmul.f32 %v1859, 0.5
    %v1861 = vtanh.pop %v1860
    %v1862 = vadd.f32 %v1861, 1.0
    %v1863 = vmul.f32 %v1862, 0.5
    %1864 = vmatprep.subr.mxu0 0.0
    %1865 = vmatpush1.msra.mxu0 0.0
    %1866 = vmatprep.subr.mxu0 0.0
    %1867 = vmatpush1.msra.mxu0 0.0
    %1868 = vmatprep.subr.mxu0 0.0
    %1869 = vmatpush1.msra.mxu0 0.0
    %1870 = vmatprep.subr.mxu0 0.0
    %1871 = vmatpush1.msra.mxu0 0.0
    %1872 = vmatprep.subr.mxu0 0.0
    %1873 = vmatpush1.msra.mxu0 0.0
    %1874 = vmatprep.subr.mxu0 0.0
    %1875 = vmatpush1.msra.mxu0 0.0
    %1876 = vmatprep.subr.mxu0 0.0
    %1877 = vmatpush1.msra.mxu0 0.0
    %1878 = vmatprep.subr.mxu0 0.0
    %1879 = vmatpush1.msra.mxu0 0.0
    %1880 = vmatprep.subr.mxu0 0.0
    %1881 = vmatpush1.msra.mxu0 0.0
    %1882 = vmatprep.subr.mxu0 0.0
    %1883 = vmatpush1.msra.mxu0 0.0
    %1884 = vmatprep.subr.mxu0 0.0
    %1885 = vmatpush1.msra.mxu0 0.0
    %1886 = vmatprep.subr.mxu0 0.0
    %1887 = vmatpush1.msra.mxu0 0.0
    %1888 = vmatprep.subr.mxu0 0.0
    %1889 = vmatpush1.msra.mxu0 %v69
    %1890 = vmatprep.subr.mxu0 0.0
    %1891 = vmatpush1.msra.mxu0 %v68
    %1892 = vmatprep.subr.mxu0 0.0
    %1893 = vmatpush1.msra.mxu0 %v67
    %1894 = vmatprep.subr.mxu0 0.0
    %1895 = vmatpush1.msra.mxu0 %v66
    %1896 = vmatprep.subr.mxu0 0.0
    %1897 = vmatpush2.msra.mxu0 0.0
    %1898 = vmatprep.subr.mxu0 0.0
    %1899 = vmatpush2.msra.mxu0 0.0
    %1900 = vmatprep.subr.mxu0 0.0
    %1901 = vmatpush2.msra.mxu0 0.0
    %1902 = vmatprep.subr.mxu0 0.0
    %1903 = vmatpush2.msra.mxu0 0.0
    %1904 = vmatprep.subr.mxu0 0.0
    %1905 = vmatpush2.msra.mxu0 0.0
    %1906 = vmatprep.subr.mxu0 0.0
    %1907 = vmatpush2.msra.mxu0 0.0
    %1908 = vmatprep.subr.mxu0 0.0
    %1909 = vmatpush2.msra.mxu0 0.0
    %1910 = vmatprep.subr.mxu0 0.0
    %1911 = vmatpush2.msra.mxu0 0.0
    %1912 = vmatprep.subr.mxu0 0.0
    %1913 = vmatpush2.msra.mxu0 0.0
    %1914 = vmatprep.subr.mxu0 0.0
    %1915 = vmatpush2.msra.mxu0 0.0
    %1916 = vmatprep.subr.mxu0 0.0
    %1917 = vmatpush2.msra.mxu0 0.0
    %1918 = vmatprep.subr.mxu0 0.0
    %1919 = vmatpush2.msra.mxu0 0.0
    %1920 = vmatprep.subr.mxu0 0.0
    %1921 = vmatpush2.msra.mxu0 0.0
    %1922 = vmatprep.subr.mxu0 0.0
    %1923 = vmatpush2.msra.mxu0 0.0
    %1924 = vmatprep.subr.mxu0 0.0
    %1925 = vmatpush2.msra.mxu0 0.0
    %1926 = vmatprep.subr.mxu0 0.0
    %1927 = vmatpush2.msra.mxu0 0.0
    %1928 = vmatprep.mubr.f32.mxu0 0.0
    %1929 = vmatmul.mubr.f32.gmra.mxu0 %v1704
    %v1930 = vpop.f32.mrf.mxu0
    %v1931 = vadd.f32 %v79, %v1930
    %v1932 = vpop.f32.mrf.mxu0
    %1933 = vdwg.mxu0
    %v1935 = vrot.slane %v1931, 2
    %v1937 = vmul.f32 %v1853, %v1935
    %1939 = vrot.lane.b32.xlu0 %v1937, 64
    %v1940 = vpop.permute.xlu0 %1939
    %v1942 = vadd.f32 %v166, %v1940
    %v1943 = vtanh.pop %v1942
    %v1944 = vsub.f32 1.0, %v1863
    %1946 = vrot.lane.b32.xlu0 %v1943, 96
    %v1947 = vpop.permute.xlu0 %1946
    %v1949 = vmul.f32 %v1944, %v1947
    %v1950 = vrot.slane %v1699, 6
    %v1952 = vmul.f32 %v1863, %v1950
    %v1953 = vadd.f32 %v1949, %v1952
    %v1954 = vlaneseq
    %v1955 = vshrl.u32 %v1954, 7
    %v1956 = vsub.s32 0, %v1955
    %v1957 = vrot.slane %v80, %v1956
    %v1959 = vrot.slane %v1953, 6
    %1960 = vrot.lane.b32.xlu0 %v1959, 96
    %v1961 = vpop.permute.xlu0 %1960
    %v1962 = vsel %vm87, %v1961, 0
    %1964 = vmatprep.subr.mxu0 0.0
    %1965 = vmatpush1.msra.mxu0 0.0
    %1966 = vmatprep.subr.mxu0 0.0
    %1967 = vmatpush1.msra.mxu0 0.0
    %1968 = vmatprep.subr.mxu0 0.0
    %1969 = vmatpush1.msra.mxu0 0.0
    %1970 = vmatprep.subr.mxu0 0.0
    %1971 = vmatpush1.msra.mxu0 0.0
    %1972 = vmatprep.subr.mxu0 0.0
    %1973 = vmatpush1.msra.mxu0 0.0
    %1974 = vmatprep.subr.mxu0 0.0
    %1975 = vmatpush1.msra.mxu0 0.0
    %1976 = vmatprep.subr.mxu0 0.0
    %1977 = vmatpush1.msra.mxu0 0.0
    %1978 = vmatprep.subr.mxu0 0.0
    %1979 = vmatpush1.msra.mxu0 0.0
    %1980 = vmatprep.subr.mxu0 0.0
    %1981 = vmatpush1.msra.mxu0 0.0
    %1982 = vmatprep.subr.mxu0 0.0
    %1983 = vmatpush1.msra.mxu0 0.0
    %1984 = vmatprep.subr.mxu0 0.0
    %1985 = vmatpush1.msra.mxu0 0.0
    %1986 = vmatprep.subr.mxu0 0.0
    %1987 = vmatpush1.msra.mxu0 0.0
    %1988 = vmatprep.subr.mxu0 0.0
    %1989 = vmatpush1.msra.mxu0 %v73
    %1990 = vmatprep.subr.mxu0 0.0
    %1991 = vmatpush1.msra.mxu0 %v72
    %1992 = vmatprep.subr.mxu0 0.0
    %1993 = vmatpush1.msra.mxu0 %v71
    %1994 = vmatprep.subr.mxu0 0.0
    %1995 = vmatpush1.msra.mxu0 %v70
    %1996 = vmatprep.subr.mxu0 0.0
    %1997 = vmatpush2.msra.mxu0 0.0
    %1998 = vmatprep.subr.mxu0 0.0
    %1999 = vmatpush2.msra.mxu0 0.0
    %2000 = vmatprep.subr.mxu0 0.0
    %2001 = vmatpush2.msra.mxu0 0.0
    %2002 = vmatprep.subr.mxu0 0.0
    %2003 = vmatpush2.msra.mxu0 0.0
    %2004 = vmatprep.subr.mxu0 0.0
    %2005 = vmatpush2.msra.mxu0 0.0
    %2006 = vmatprep.subr.mxu0 0.0
    %2007 = vmatpush2.msra.mxu0 0.0
    %2008 = vmatprep.subr.mxu0 0.0
    %2009 = vmatpush2.msra.mxu0 0.0
    %2010 = vmatprep.subr.mxu0 0.0
    %2011 = vmatpush2.msra.mxu0 0.0
    %2012 = vmatprep.subr.mxu0 0.0
    %2013 = vmatpush2.msra.mxu0 0.0
    %2014 = vmatprep.subr.mxu0 0.0
    %2015 = vmatpush2.msra.mxu0 0.0
    %2016 = vmatprep.subr.mxu0 0.0
    %2017 = vmatpush2.msra.mxu0 0.0
    %2018 = vmatprep.subr.mxu0 0.0
    %2019 = vmatpush2.msra.mxu0 0.0
    %2020 = vmatprep.subr.mxu0 0.0
    %2021 = vmatpush2.msra.mxu0 0.0
    %2022 = vmatprep.subr.mxu0 0.0
    %2023 = vmatpush2.msra.mxu0 0.0
    %2024 = vmatprep.subr.mxu0 0.0
    %2025 = vmatpush2.msra.mxu0 0.0
    %2026 = vmatprep.subr.mxu0 0.0
    %2027 = vmatpush2.msra.mxu0 0.0
    %2028 = vmatprep.mubr.f32.mxu0 0.0
    %2029 = vmatmul.mubr.f32.gmra.mxu0 %v1962
    %v2030 = vpop.f32.mrf.mxu0
    %v2031 = vadd.f32 %v1957, %v2030
    %v2032 = vpop.f32.mrf.mxu0
    %2033 = vdwg.mxu0
    %vm2034 = vcmask 254976
    %v2035 = vsel %vm2034, %v2031, -inf
    %2036 = vmax.xlane.f32.xlu0 %v2035
    %v2037 = vpop.xlane.xlu0 %2036
    %v2038 = vsub.f32 %v2031, %v2037
    %v2039 = vmul.f32 %v2038, 1.442695
    %v2040 = vpow.pop %v2039
    %v2041 = vlaneseq
    %v2042 = vshrl.u32 %v2041, 7
    %v2043 = vadd.s32 %v2042, 8
    %v2044 = vadd.s32 %v2042, 16
    %v2045 = vadd.s32 %v2042, 24
    %v2046 = vlaneseq
    %v2047 = vand.u32 %v2046, 127
    %v2048 = vmul.u32 %v2047, 8
    %vm2049 = vcmp.ge.s32.totalorder %v2042, %v2048
    %vm2050 = vcmp.ge.s32.totalorder %v2043, %v2048
    %vm2051 = vcmp.ge.s32.totalorder %v2044, %v2048
    %vm2052 = vcmp.ge.s32.totalorder %v2045, %v2048
    %v2053 = vadd.s32 %v2047, 1
    %v2054 = vmul.u32 %v2053, 8
    %vm2055 = vcmp.lt.s32.totalorder %v2042, %v2054
    %vm2056 = vcmp.lt.s32.totalorder %v2043, %v2054
    %vm2057 = vcmp.lt.s32.totalorder %v2044, %v2054
    %vm2058 = vcmp.lt.s32.totalorder %v2045, %v2054
    %vm2059 = vmand %vm2049, %vm2055
    %vm2060 = vmand %vm2050, %vm2056
    %vm2061 = vmand %vm2051, %vm2057
    %vm2062 = vmand %vm2052, %vm2058
    %v2063 = vsel %vm2059, 1, 0
    %v2064 = vsel %vm2060, 1, 0
    %v2065 = vsel %vm2061, 1, 0
    %v2066 = vsel %vm2062, 1, 0
    %v2067 = vcvt.s32.f32 %v2063
    %v2068 = vcvt.s32.f32 %v2064
    %v2069 = vcvt.s32.f32 %v2065
    %v2070 = vcvt.s32.f32 %v2066
    %v2071 = vmul.u32 %v2042, 8
    %vm2072 = vcmp.ge.s32.totalorder %v2047, %v2071
    %v2073 = vadd.s32 %v2042, 1
    %v2074 = vmul.u32 %v2073, 8
    %vm2075 = vcmp.lt.s32.totalorder %v2047, %v2074
    %vm2076 = vmand %vm2072, %vm2075
    %v2077 = vsel %vm2076, 1, 0
    %v2078 = vcvt.s32.f32 %v2077
    %v2080 = vsel %vm87, %v2040, 0
    %2082 = vmatprep.subr.mxu0 0.0
    %2083 = vmatpush1.msra.mxu0 0.0
    %2084 = vmatprep.subr.mxu0 0.0
    %2085 = vmatpush1.msra.mxu0 0.0
    %2086 = vmatprep.subr.mxu0 0.0
    %2087 = vmatpush1.msra.mxu0 0.0
    %2088 = vmatprep.subr.mxu0 0.0
    %2089 = vmatpush1.msra.mxu0 0.0
    %2090 = vmatprep.subr.mxu0 0.0
    %2091 = vmatpush1.msra.mxu0 0.0
    %2092 = vmatprep.subr.mxu0 0.0
    %2093 = vmatpush1.msra.mxu0 0.0
    %2094 = vmatprep.subr.mxu0 0.0
    %2095 = vmatpush1.msra.mxu0 0.0
    %2096 = vmatprep.subr.mxu0 0.0
    %2097 = vmatpush1.msra.mxu0 0.0
    %2098 = vmatprep.subr.mxu0 0.0
    %2099 = vmatpush1.msra.mxu0 0.0
    %2100 = vmatprep.subr.mxu0 0.0
    %2101 = vmatpush1.msra.mxu0 0.0
    %2102 = vmatprep.subr.mxu0 0.0
    %2103 = vmatpush1.msra.mxu0 0.0
    %2104 = vmatprep.subr.mxu0 0.0
    %2105 = vmatpush1.msra.mxu0 0.0
    %2106 = vmatprep.subr.mxu0 0.0
    %2107 = vmatpush1.msra.mxu0 %v2070
    %2108 = vmatprep.subr.mxu0 0.0
    %2109 = vmatpush1.msra.mxu0 %v2069
    %2110 = vmatprep.subr.mxu0 0.0
    %2111 = vmatpush1.msra.mxu0 %v2068
    %2112 = vmatprep.subr.mxu0 0.0
    %2113 = vmatpush1.msra.mxu0 %v2067
    %2114 = vmatprep.subr.mxu0 0.0
    %2115 = vmatpush2.msra.mxu0 0.0
    %2116 = vmatprep.subr.mxu0 0.0
    %2117 = vmatpush2.msra.mxu0 0.0
    %2118 = vmatprep.subr.mxu0 0.0
    %2119 = vmatpush2.msra.mxu0 0.0
    %2120 = vmatprep.subr.mxu0 0.0
    %2121 = vmatpush2.msra.mxu0 0.0
    %2122 = vmatprep.subr.mxu0 0.0
    %2123 = vmatpush2.msra.mxu0 0.0
    %2124 = vmatprep.subr.mxu0 0.0
    %2125 = vmatpush2.msra.mxu0 0.0
    %2126 = vmatprep.subr.mxu0 0.0
    %2127 = vmatpush2.msra.mxu0 0.0
    %2128 = vmatprep.subr.mxu0 0.0
    %2129 = vmatpush2.msra.mxu0 0.0
    %2130 = vmatprep.subr.mxu0 0.0
    %2131 = vmatpush2.msra.mxu0 0.0
    %2132 = vmatprep.subr.mxu0 0.0
    %2133 = vmatpush2.msra.mxu0 0.0
    %2134 = vmatprep.subr.mxu0 0.0
    %2135 = vmatpush2.msra.mxu0 0.0
    %2136 = vmatprep.subr.mxu0 0.0
    %2137 = vmatpush2.msra.mxu0 0.0
    %2138 = vmatprep.subr.mxu0 0.0
    %2139 = vmatpush2.msra.mxu0 0.0
    %2140 = vmatprep.subr.mxu0 0.0
    %2141 = vmatpush2.msra.mxu0 0.0
    %2142 = vmatprep.subr.mxu0 0.0
    %2143 = vmatpush2.msra.mxu0 0.0
    %2144 = vmatprep.subr.mxu0 0.0
    %2145 = vmatpush2.msra.mxu0 0.0
    %2146 = vmatprep.mubr.f32.mxu0 0.0
    %2147 = vmatmul.mubr.f32.gmra.mxu0 %v2080
    %v2148 = vpop.f32.mrf.mxu0
    %v2149 = vadd.f32 0.0, %v2148
    %v2150 = vpop.f32.mrf.mxu0
    %2151 = vdwg.mxu0
    %vm2152 = vcmask 31744
    %v2154 = vsel %vm2152, %v2149, 0
    %vm2156 = vcmask 1043456
    %v2158 = vsel %vm2156, %v2078, 0
    %2160 = vmatprep.subr.mxu0 0.0
    %2161 = vmatpush1.msra.mxu0 0.0
    %2162 = vmatprep.subr.mxu0 0.0
    %2163 = vmatpush1.msra.mxu0 0.0
    %2164 = vmatprep.subr.mxu0 0.0
    %2165 = vmatpush1.msra.mxu0 0.0
    %2166 = vmatprep.subr.mxu0 0.0
    %2167 = vmatpush1.msra.mxu0 0.0
    %2168 = vmatprep.subr.mxu0 0.0
    %2169 = vmatpush1.msra.mxu0 0.0
    %2170 = vmatprep.subr.mxu0 0.0
    %2171 = vmatpush1.msra.mxu0 0.0
    %2172 = vmatprep.subr.mxu0 0.0
    %2173 = vmatpush1.msra.mxu0 0.0
    %2174 = vmatprep.subr.mxu0 0.0
    %2175 = vmatpush1.msra.mxu0 0.0
    %2176 = vmatprep.subr.mxu0 0.0
    %2177 = vmatpush1.msra.mxu0 0.0
    %2178 = vmatprep.subr.mxu0 0.0
    %2179 = vmatpush1.msra.mxu0 0.0
    %2180 = vmatprep.subr.mxu0 0.0
    %2181 = vmatpush1.msra.mxu0 0.0
    %2182 = vmatprep.subr.mxu0 0.0
    %2183 = vmatpush1.msra.mxu0 0.0
    %2184 = vmatprep.subr.mxu0 0.0
    %2185 = vmatpush1.msra.mxu0 0.0
    %2186 = vmatprep.subr.mxu0 0.0
    %2187 = vmatpush1.msra.mxu0 0.0
    %2188 = vmatprep.subr.mxu0 0.0
    %2189 = vmatpush1.msra.mxu0 0.0
    %2190 = vmatprep.subr.mxu0 0.0
    %2191 = vmatpush1.msra.mxu0 %v2158
    %2192 = vmatprep.subr.mxu0 0.0
    %2193 = vmatpush2.msra.mxu0 0.0
    %2194 = vmatprep.subr.mxu0 0.0
    %2195 = vmatpush2.msra.mxu0 0.0
    %2196 = vmatprep.subr.mxu0 0.0
    %2197 = vmatpush2.msra.mxu0 0.0
    %2198 = vmatprep.subr.mxu0 0.0
    %2199 = vmatpush2.msra.mxu0 0.0
    %2200 = vmatprep.subr.mxu0 0.0
    %2201 = vmatpush2.msra.mxu0 0.0
    %2202 = vmatprep.subr.mxu0 0.0
    %2203 = vmatpush2.msra.mxu0 0.0
    %2204 = vmatprep.subr.mxu0 0.0
    %2205 = vmatpush2.msra.mxu0 0.0
    %2206 = vmatprep.subr.mxu0 0.0
    %2207 = vmatpush2.msra.mxu0 0.0
    %2208 = vmatprep.subr.mxu0 0.0
    %2209 = vmatpush2.msra.mxu0 0.0
    %2210 = vmatprep.subr.mxu0 0.0
    %2211 = vmatpush2.msra.mxu0 0.0
    %2212 = vmatprep.subr.mxu0 0.0
    %2213 = vmatpush2.msra.mxu0 0.0
    %2214 = vmatprep.subr.mxu0 0.0
    %2215 = vmatpush2.msra.mxu0 0.0
    %2216 = vmatprep.subr.mxu0 0.0
    %2217 = vmatpush2.msra.mxu0 0.0
    %2218 = vmatprep.subr.mxu0 0.0
    %2219 = vmatpush2.msra.mxu0 0.0
    %2220 = vmatprep.subr.mxu0 0.0
    %2221 = vmatpush2.msra.mxu0 0.0
    %2222 = vmatprep.subr.mxu0 0.0
    %2223 = vmatpush2.msra.mxu0 0.0
    %2224 = vmatprep.mubr.f32.mxu0 0.0
    %2225 = vmatmul.mubr.f32.gmra.mxu0 %v2154
    %v2226 = vpop.f32.mrf.mxu0
    %v2227 = vadd.f32 0.0, %v2226
    %v2228 = vpop.f32.mrf.mxu0
    %2229 = vdwg.mxu0
    %v2230 = vrcp.pop %v2227
    %v2231 = vmul.f32 %v2040, %v2230
    %2232 = vst.msk [vmem:[#allocation8] sm:$0x3] %vm2034, %v2231
    // Predicated region
    $region26: #{tpu_custom_call.1} parent=1 // pred_check
      _
    $region27: #{tpu_custom_call.1} parent=1 // pred_check_branch
      %2234 = sbr.rel (0) target = $region29
    $region28: #{tpu_custom_call.1} parent=1 // pred_region
      %s2236 = ssub.s32 32, 32
      %2237 = vsyncadd [#allocation4], %s2236
      %s2239 = sshll.u32 [#allocation8], 4
      %s2240 = int_to_ptr.vmem [resolvable:$true] %s2239
      %2242 = dma.vmem_to_hbm [thread:$0]  %s2240, 32, %s3, [#allocation4]
    $region29: #{tpu_custom_call.1} parent=1 // pred_fallthru
      _
    // Predicated region
    $region30: #{tpu_custom_call.1} parent=1 // pred_check
      _
    $region31: #{tpu_custom_call.1} parent=1 // pred_check_branch
      %2244 = sbr.rel (0) target = $region33
    $region32: #{tpu_custom_call.1} parent=1 // pred_region
      %2245 = dma.done [#allocation4], 32
    $region33: #{tpu_custom_call.1} parent=1 // pred_fallthru
      _
    %2246 = vsyncpa [#allocation3], 1
    %2247 = vsyncpa [#allocation6], 1
    %2248 = vsyncpa [#allocation4], 1

</llo_original>
